<compile_context>
chip_gen: v5e
topology: v5e:2x2
jax: 0.10.0
libtpu: 0.0.40
codegen_flags: <defaults>
</compile_context>

<pallas_src>
import functools

import jax
import jax.numpy as jnp
from jax.experimental import pallas as pl
from jax.experimental.pallas import tpu as pltpu

NP = 8  # per-sample params: [hflip, vflip, bright, contrast, gamma, blur, w0, w1]


# ---------------------------------- kernel ----------------------------------
def _augment_kernel(c_img, c_mask, H, W,
                    params_ref, img_ref, msk_ref, img_out_ref, msk_out_ref,
                    work_ref):
    f32, bf16 = jnp.float32, jnp.bfloat16
    c_tot = c_img + c_mask
    R = c_img * H

    b = pl.program_id(0)
    base = b * NP
    hf = params_ref[base + 0]
    vf = params_ref[base + 1]
    br = params_ref[base + 2]
    ct = params_ref[base + 3]
    gm = params_ref[base + 4]
    bl = params_ref[base + 5]
    w0 = params_ref[base + 6]
    w1 = params_ref[base + 7]

    # ---- stage cat(images, masks) into the f32 work buffer (in-kernel concat,
    # native input dtypes converted here; no wrapper-side HBM concat) --------
    work_ref[0:c_img] = img_ref[0].astype(f32)
    work_ref[c_img:c_tot] = msk_ref[0].astype(f32)

    # ---- geometric: RandomHorizontalFlip / RandomVerticalFlip ---------------
    # Gated: MXU work skipped when the flag is off. Permutation matrices are
    # 0/1 (exact in bf16); operands cast to bf16, accumulate in f32.
    # TODO(synk): switch to lax.rev once Pallas-TPU guarantees a lowering for
    # reverse; the permutation matmul is kept as the guaranteed formulation.
    @pl.when(hf > 0.5)
    def _():
        rw = jax.lax.broadcasted_iota(jnp.int32, (W, W), 0)
        cw = jax.lax.broadcasted_iota(jnp.int32, (W, W), 1)
        anti_w = (rw + cw == W - 1).astype(bf16)
        # one fused matmul for images AND masks (W is the lane axis, no transpose)
        x2 = work_ref[...].reshape(c_tot * H, W).astype(bf16)
        work_ref[...] = jnp.dot(
            x2, anti_w, preferred_element_type=f32).reshape(c_tot, H, W)

    @pl.when(vf > 0.5)
    def _():
        rh = jax.lax.broadcasted_iota(jnp.int32, (H, H), 0)
        ch = jax.lax.broadcasted_iota(jnp.int32, (H, H), 1)
        anti_h = (rh + ch == H - 1).astype(bf16)
        for c in range(c_tot):          # tiny static unroll over channels
            xc = work_ref[c].astype(bf16)                       # (H, W)
            work_ref[c] = jnp.dot(anti_h, xc, preferred_element_type=f32)

    # masks: geometric only
    msk_out_ref[0] = work_ref[c_img:c_tot].astype(msk_out_ref.dtype)

    # ---- radiometric (images only) -------------------------------------------
    img = work_ref[0:c_img]
    img = jnp.clip(img + br, 0.0, 1.0)                     # RandomBrightness
    img = jnp.clip(img * ct, 0.0, 1.0)                     # RandomContrast
    img = jnp.exp(gm * jnp.log(jnp.maximum(img, 1e-6)))    # RandomGamma (EUP)

    @pl.when(bl <= 0.5)                                    # blur off: pass-through
    def _():
        img_out_ref[0] = img.astype(img_out_ref.dtype)

    @pl.when(bl > 0.5)                                     # RandomGaussianBlur 3x3
    def _():
        # separable reflect-101 3-tap stencil: XLU cyclic rolls + additive
        # boundary corrections on narrow (1,1,W)/(1,H,1) masks.
        col = jax.lax.broadcasted_iota(jnp.int32, (1, 1, W), 2)
        row = jax.lax.broadcasted_iota(jnp.int32, (1, H, 1), 1)
        lmask = (col == 0).astype(f32)
        rmask = (col == W - 1).astype(f32)
        tmask = (row == 0).astype(f32)
        bmask = (row == H - 1).astype(f32)

        # horizontal pass (lane rolls wrap within each row -> within channel)
        x2 = img.reshape(R, W)
        sh = (pltpu.roll(x2, 1, 1) +
              pltpu.roll(x2, W - 1, 1)).reshape(c_img, H, W)
        h = w1 * img + w0 * sh
        h = h + (w0 * lmask) * (img[:, :, 1:2] - img[:, :, W - 1:W])
        h = h + (w0 * rmask) * (img[:, :, W - 2:W - 1] - img[:, :, 0:1])

        # vertical pass (flattened sublane roll wraps across channels; the
        # per-channel top/bottom rows are corrected by subtracting the wrapped
        # term, which is just the corresponding row of the rolled array)
        h2 = h.reshape(R, W)
        sd = pltpu.roll(h2, 1, 0).reshape(c_img, H, W)       # row r <- r-1 (cyclic)
        su = pltpu.roll(h2, R - 1, 0).reshape(c_img, H, W)   # row r <- r+1 (cyclic)
        v = w1 * h + w0 * (sd + su)
        v = v + (w0 * tmask) * (h[:, 1:2, :] - sd[:, 0:1, :])
        v = v + (w0 * bmask) * (h[:, H - 2:H - 1, :] - su[:, H - 1:H, :])
        img_out_ref[0] = v.astype(img_out_ref.dtype)


# ---------------------------------- wrapper ----------------------------------
def data_augmentation(images, masks, params):
    B, c_img, H, W = images.shape
    c_mask = masks.shape[1]
    c_tot = c_img + c_mask
    assert H % 8 == 0 and W % 8 == 0, "H, W must be sublane-aligned (mult. of 8)"
    assert params.shape == (B * NP,)
    # TODO(synk): for peak store throughput W should be a multiple of 128
    # (lane-dense); smaller W pads every vreg and masks the stores.

    kernel = functools.partial(_augment_kernel, c_img, c_mask, H, W)

    in_specs = [
        pl.BlockSpec(memory_space=pltpu.MemorySpace.SMEM),            # params (B*NP,)
        pl.BlockSpec((1, c_img, H, W), lambda b: (b, 0, 0, 0)),       # images
        pl.BlockSpec((1, c_mask, H, W), lambda b: (b, 0, 0, 0)),      # masks
    ]
    out_specs = (
        pl.BlockSpec((1, c_img, H, W), lambda b: (b, 0, 0, 0)),
        pl.BlockSpec((1, c_mask, H, W), lambda b: (b, 0, 0, 0)),
    )
    out_shape = (
        jax.ShapeDtypeStruct((B, c_img, H, W), jnp.float32),
        jax.ShapeDtypeStruct((B, c_mask, H, W), jnp.float32),
    )
    scratch_shapes = [pltpu.VMEM((c_tot, H, W), jnp.float32)]

    # Per-generation VMEM budget: half of physical capacity (64 MiB on 128-MiB
    # v5e/v6e, 32 MiB on 64-MiB v7x), floored so small blocks keep headroom.
    blk_in = (c_img * jnp.dtype(images.dtype).itemsize
              + c_mask * jnp.dtype(masks.dtype).itemsize) * H * W
    blk_out = c_tot * H * W * 4
    est = 2 * blk_in + 2 * blk_out + c_tot * H * W * 4 + 6 * c_img * H * W * 4
    try:
        vmem_cap = pltpu.get_tpu_info().vmem_capacity_bytes
    except Exception:
        vmem_cap = 64 * 2**20
    vmem_limit = int(min(vmem_cap // 2, max(16 * 2**20, 2 * est)))

    # TODO(synk): verify the batch axis is split across both v7x TensorCores
    # with "parallel" semantics; if not, switch to pltpu.CORE_PARALLEL.
    # TODO(synk): if DMA is exposed after the gated/bf16 flips, add
    # pipeline_mode=pl.Buffered(3) on the image/mask in_specs.
    return pl.pallas_call(
        kernel,
        grid=(B,),
        in_specs=in_specs,
        out_specs=out_specs,
        out_shape=out_shape,
        scratch_shapes=scratch_shapes,
        compiler_params=pltpu.CompilerParams(
            dimension_semantics=("parallel",),
            vmem_limit_bytes=vmem_limit),
    )(params, images, masks)


# --------------------------------- reference ---------------------------------
def _reference(images, masks, params):
    B, c_img = images.shape[:2]
    p = params.reshape(B, NP)
    hf, vf, br, ct, gm, bl, w0, w1 = [p[:, k][:, None, None, None]
                                      for k in range(NP)]
    x = jnp.concatenate([images, masks], axis=1)
    x = hf * x[:, :, :, ::-1] + (1.0 - hf) * x
    x = vf * x[:, :, ::-1, :] + (1.0 - vf) * x
    img, msk = x[:, :c_img], x[:, c_img:]
    img = jnp.clip(img + br, 0.0, 1.0)
    img = jnp.clip(img * ct, 0.0, 1.0)
    img = jnp.exp(gm * jnp.log(jnp.maximum(img, 1e-6)))
    pw = jnp.pad(img, ((0, 0), (0, 0), (0, 0), (1, 1)), mode="reflect")
    h = w0 * pw[..., :-2] + w1 * pw[..., 1:-1] + w0 * pw[..., 2:]
    ph = jnp.pad(h, ((0, 0), (0, 0), (1, 1), (0, 0)), mode="reflect")
    v = w0 * ph[..., :-2, :] + w1 * ph[..., 1:-1, :] + w0 * ph[..., 2:, :]
    img = bl * v + (1.0 - bl) * img
    return img, msk


# ------------------------------------ main ------------------------------------
if __name__ == "__main__":
    B, C_IMG, C_MASK, H, W = 4, 4, 1, 16, 16

    key = jax.random.PRNGKey(0)
    k_img, k_mask, k1, k2, k3, k4, k5, k6, k7 = jax.random.split(key, 9)

    images = jax.random.uniform(k_img, (B, C_IMG, H, W), dtype=jnp.float32)
    masks = (jax.random.uniform(k_mask, (B, C_MASK, H, W)) > 0.5).astype(jnp.float32)

    # Kornia-style per-sample random augmentation parameters
    # (equivalent of torch.manual_seed(seed) sampling in the module's forward).
    hflip = (jax.random.uniform(k1, (B,)) < 0.5).astype(jnp.float32)
    vflip = (jax.random.uniform(k2, (B,)) < 0.5).astype(jnp.float32)
    bright = jax.random.uniform(k3, (B,), minval=-0.2, maxval=0.2)
    contrast = jax.random.uniform(k4, (B,), minval=0.8, maxval=1.2)
    gamma = jax.random.uniform(k5, (B,), minval=0.8, maxval=1.2)
    blur_on = (jax.random.uniform(k6, (B,)) < 0.5).astype(jnp.float32)
    sigma = jax.random.uniform(k7, (B,), minval=0.5, maxval=1.5)
    e = jnp.exp(-0.5 / (sigma * sigma))           # 3-tap Gaussian weights
    w0 = e / (1.0 + 2.0 * e)
    w1 = 1.0 / (1.0 + 2.0 * e)
    params = jnp.stack([hflip, vflip, bright, contrast, gamma, blur_on, w0, w1],
                       axis=1).reshape(-1).astype(jnp.float32)

    img_out, mask_out = data_augmentation(images, masks, params)
    jax.block_until_ready((img_out, mask_out))

    ref_img, ref_mask = _reference(images, masks, params)
    assert img_out.shape == (B, C_IMG, H, W)
    assert mask_out.shape == (B, C_MASK, H, W)
    assert jnp.allclose(img_out, ref_img, atol=1e-2), "image mismatch"
    assert jnp.allclose(mask_out, ref_mask, atol=1e-2), "mask mismatch"

    print("KERNEL_OK")
</pallas_src>

<mosaic_0001>
module attributes {stable_mosaic.version = 11 : i64} {
  func.func @_augment_kernel(%arg0: i32, %arg1: memref<32xf32, #tpu.memory_space<smem>>, %arg2: memref<1x4x16x16xf32, #tpu.memory_space<vmem>>, %arg3: memref<1x1x16x16xf32, #tpu.memory_space<vmem>>, %arg4: memref<1x4x16x16xf32, #tpu.memory_space<vmem>>, %arg5: memref<1x1x16x16xf32, #tpu.memory_space<vmem>>, %arg6: memref<5x16x16xf32, #tpu.memory_space<vmem>>) attributes {dimension_semantics = [#tpu.dimension_semantics<parallel>], iteration_bounds = array<i64: 4>, scalar_prefetch = 0 : i64, scratch_operands = 1 : i64, tpu.core_type = #tpu.core_type<tc>, window_params = [{transform_indices = @transform_0, window_bounds = array<i64: 32>}, {transform_indices = @transform_1, window_bounds = array<i64: 1, 4, 16, 16>}, {transform_indices = @transform_2, window_bounds = array<i64: 1, 1, 16, 16>}, {transform_indices = @transform_3, window_bounds = array<i64: 1, 4, 16, 16>}, {transform_indices = @transform_4, window_bounds = array<i64: 1, 1, 16, 16>}]} {
    %c8_i32 = arith.constant 8 : i32
    %0 = arith.muli %arg0, %c8_i32 : i32
    %c0_i32 = arith.constant 0 : i32
    %1 = arith.addi %0, %c0_i32 : i32
    %2 = arith.index_cast %1 : i32 to index
    %3 = memref.load %arg1[%2] : memref<32xf32, #tpu.memory_space<smem>>
    %c1_i32 = arith.constant 1 : i32
    %4 = arith.addi %0, %c1_i32 : i32
    %5 = arith.index_cast %4 : i32 to index
    %6 = memref.load %arg1[%5] : memref<32xf32, #tpu.memory_space<smem>>
    %c2_i32 = arith.constant 2 : i32
    %7 = arith.addi %0, %c2_i32 : i32
    %8 = arith.index_cast %7 : i32 to index
    %9 = memref.load %arg1[%8] : memref<32xf32, #tpu.memory_space<smem>>
    %c3_i32 = arith.constant 3 : i32
    %10 = arith.addi %0, %c3_i32 : i32
    %11 = arith.index_cast %10 : i32 to index
    %12 = memref.load %arg1[%11] : memref<32xf32, #tpu.memory_space<smem>>
    %c4_i32 = arith.constant 4 : i32
    %13 = arith.addi %0, %c4_i32 : i32
    %14 = arith.index_cast %13 : i32 to index
    %15 = memref.load %arg1[%14] : memref<32xf32, #tpu.memory_space<smem>>
    %c5_i32 = arith.constant 5 : i32
    %16 = arith.addi %0, %c5_i32 : i32
    %17 = arith.index_cast %16 : i32 to index
    %18 = memref.load %arg1[%17] : memref<32xf32, #tpu.memory_space<smem>>
    %c6_i32 = arith.constant 6 : i32
    %19 = arith.addi %0, %c6_i32 : i32
    %20 = arith.index_cast %19 : i32 to index
    %21 = memref.load %arg1[%20] : memref<32xf32, #tpu.memory_space<smem>>
    %c7_i32 = arith.constant 7 : i32
    %22 = arith.addi %0, %c7_i32 : i32
    %23 = arith.index_cast %22 : i32 to index
    %24 = memref.load %arg1[%23] : memref<32xf32, #tpu.memory_space<smem>>
    %c0 = arith.constant 0 : index
    %c0_0 = arith.constant 0 : index
    %c0_1 = arith.constant 0 : index
    %c0_2 = arith.constant 0 : index
    %25 = vector.load %arg2[%c0, %c0_0, %c0_1, %c0_2] : memref<1x4x16x16xf32, #tpu.memory_space<vmem>>, vector<1x4x16x16xf32>
    %26 = vector.shape_cast %25 : vector<1x4x16x16xf32> to vector<4x16x16xf32>
    %c0_3 = arith.constant 0 : index
    %c0_4 = arith.constant 0 : index
    %c0_5 = arith.constant 0 : index
    %27 = vector.load %arg6[%c0_3, %c0_4, %c0_5] : memref<5x16x16xf32, #tpu.memory_space<vmem>>, vector<4x16x16xf32>
    tpu.vector_store %arg6[%c0_3, %c0_4, %c0_5], %26 {strides = array<i32>} : memref<5x16x16xf32, #tpu.memory_space<vmem>>, vector<4x16x16xf32>,
    %c0_6 = arith.constant 0 : index
    %c0_7 = arith.constant 0 : index
    %c0_8 = arith.constant 0 : index
    %c0_9 = arith.constant 0 : index
    %28 = vector.load %arg3[%c0_6, %c0_7, %c0_8, %c0_9] : memref<1x1x16x16xf32, #tpu.memory_space<vmem>>, vector<1x1x16x16xf32>
    %29 = vector.shape_cast %28 : vector<1x1x16x16xf32> to vector<1x16x16xf32>
    %c4 = arith.constant 4 : index
    %c0_10 = arith.constant 0 : index
    %c0_11 = arith.constant 0 : index
    %30 = vector.load %arg6[%c4, %c0_10, %c0_11] : memref<5x16x16xf32, #tpu.memory_space<vmem>>, vector<1x16x16xf32>
    tpu.vector_store %arg6[%c4, %c0_10, %c0_11], %29 {strides = array<i32>} : memref<5x16x16xf32, #tpu.memory_space<vmem>>, vector<1x16x16xf32>,
    %cst = arith.constant 5.000000e-01 : f32
    %31 = arith.cmpf ogt, %3, %cst : f32
    %32 = arith.extui %31 : i1 to i32
    %c0_i32_12 = arith.constant 0 : i32
    %33 = arith.cmpi ne, %32, %c0_i32_12 : i32
    scf.if %33 {
      %66 = tpu.iota {dimensions = array<i32: 0>} : vector<16x16xi32>
      %67 = tpu.iota {dimensions = array<i32: 1>} : vector<16x16xi32>
      %68 = arith.addi %66, %67 : vector<16x16xi32>
      %c15_i32 = arith.constant 15 : i32
      %69 = vector.broadcast %c15_i32 : i32 to vector<16x16xi32>
      %70 = arith.cmpi eq, %68, %69 : vector<16x16xi32>
      %71 = arith.extui %70 : vector<16x16xi1> to vector<16x16xi32>
      %72 = arith.sitofp %71 : vector<16x16xi32> to vector<16x16xf32>
      %73 = arith.truncf %72 : vector<16x16xf32> to vector<16x16xbf16>
      %c0_34 = arith.constant 0 : index
      %c0_35 = arith.constant 0 : index
      %c0_36 = arith.constant 0 : index
      %74 = vector.load %arg6[%c0_34, %c0_35, %c0_36] : memref<5x16x16xf32, #tpu.memory_space<vmem>>, vector<5x16x16xf32>
      %75 = vector.shape_cast %74 : vector<5x16x16xf32> to vector<80x16xf32>
      %76 = arith.truncf %75 : vector<80x16xf32> to vector<80x16xbf16>
      %cst_37 = arith.constant dense<0.000000e+00> : vector<80x16xf32>
      %77 = tpu.matmul %76, %73, %cst_37 {dimension_numbers = #tpu.dot_dimension_numbers<[1], [0], [0], [1], [0, 0, 1, 1], [], []>} : vector<80x16xbf16>, vector<16x16xbf16>, vector<80x16xf32> -> vector<80x16xf32>
      %78 = vector.shape_cast %77 : vector<80x16xf32> to vector<5x16x16xf32>
      %c0_38 = arith.constant 0 : index
      %c0_39 = arith.constant 0 : index
      %c0_40 = arith.constant 0 : index
      %79 = vector.load %arg6[%c0_38, %c0_39, %c0_40] : memref<5x16x16xf32, #tpu.memory_space<vmem>>, vector<5x16x16xf32>
      tpu.vector_store %arg6[%c0_38, %c0_39, %c0_40], %78 {strides = array<i32>} : memref<5x16x16xf32, #tpu.memory_space<vmem>>, vector<5x16x16xf32>,
    } else {
    }
    %cst_13 = arith.constant 5.000000e-01 : f32
    %34 = arith.cmpf ogt, %6, %cst_13 : f32
    %35 = arith.extui %34 : i1 to i32
    %c0_i32_14 = arith.constant 0 : i32
    %36 = arith.cmpi ne, %35, %c0_i32_14 : i32
    scf.if %36 {
      %66 = tpu.iota {dimensions = array<i32: 0>} : vector<16x16xi32>
      %67 = tpu.iota {dimensions = array<i32: 1>} : vector<16x16xi32>
      %68 = arith.addi %66, %67 : vector<16x16xi32>
      %c15_i32 = arith.constant 15 : i32
      %69 = vector.broadcast %c15_i32 : i32 to vector<16x16xi32>
      %70 = arith.cmpi eq, %68, %69 : vector<16x16xi32>
      %71 = arith.extui %70 : vector<16x16xi1> to vector<16x16xi32>
      %72 = arith.sitofp %71 : vector<16x16xi32> to vector<16x16xf32>
      %73 = arith.truncf %72 : vector<16x16xf32> to vector<16x16xbf16>
      %c0_34 = arith.constant 0 : index
      %c0_35 = arith.constant 0 : index
      %c0_36 = arith.constant 0 : index
      %74 = vector.load %arg6[%c0_34, %c0_35, %c0_36] : memref<5x16x16xf32, #tpu.memory_space<vmem>>, vector<1x16x16xf32>
      %75 = vector.shape_cast %74 : vector<1x16x16xf32> to vector<16x16xf32>
      %76 = arith.truncf %75 : vector<16x16xf32> to vector<16x16xbf16>
      %cst_37 = arith.constant dense<0.000000e+00> : vector<16x16xf32>
      %77 = tpu.matmul %73, %76, %cst_37 {dimension_numbers = #tpu.dot_dimension_numbers<[1], [0], [0], [1], [0, 0, 1, 1], [], []>} : vector<16x16xbf16>, vector<16x16xbf16>, vector<16x16xf32> -> vector<16x16xf32>
      %c0_38 = arith.constant 0 : index
      %c0_39 = arith.constant 0 : index
      %c0_40 = arith.constant 0 : index
      %78 = vector.load %arg6[%c0_38, %c0_39, %c0_40] : memref<5x16x16xf32, #tpu.memory_space<vmem>>, vector<1x16x16xf32>
      %79 = vector.shape_cast %78 : vector<1x16x16xf32> to vector<16x16xf32>
      %80 = vector.shape_cast %77 : vector<16x16xf32> to vector<1x16x16xf32>
      tpu.vector_store %arg6[%c0_38, %c0_39, %c0_40], %80 {strides = array<i32>} : memref<5x16x16xf32, #tpu.memory_space<vmem>>, vector<1x16x16xf32>,
      %c1 = arith.constant 1 : index
      %c0_41 = arith.constant 0 : index
      %c0_42 = arith.constant 0 : index
      %81 = vector.load %arg6[%c1, %c0_41, %c0_42] : memref<5x16x16xf32, #tpu.memory_space<vmem>>, vector<1x16x16xf32>
      %82 = vector.shape_cast %81 : vector<1x16x16xf32> to vector<16x16xf32>
      %83 = arith.truncf %82 : vector<16x16xf32> to vector<16x16xbf16>
      %cst_43 = arith.constant dense<0.000000e+00> : vector<16x16xf32>
      %84 = tpu.matmul %73, %83, %cst_43 {dimension_numbers = #tpu.dot_dimension_numbers<[1], [0], [0], [1], [0, 0, 1, 1], [], []>} : vector<16x16xbf16>, vector<16x16xbf16>, vector<16x16xf32> -> vector<16x16xf32>
      %c1_44 = arith.constant 1 : index
      %c0_45 = arith.constant 0 : index
      %c0_46 = arith.constant 0 : index
      %85 = vector.load %arg6[%c1_44, %c0_45, %c0_46] : memref<5x16x16xf32, #tpu.memory_space<vmem>>, vector<1x16x16xf32>
      %86 = vector.shape_cast %85 : vector<1x16x16xf32> to vector<16x16xf32>
      %87 = vector.shape_cast %84 : vector<16x16xf32> to vector<1x16x16xf32>
      tpu.vector_store %arg6[%c1_44, %c0_45, %c0_46], %87 {strides = array<i32>} : memref<5x16x16xf32, #tpu.memory_space<vmem>>, vector<1x16x16xf32>,
      %c2 = arith.constant 2 : index
      %c0_47 = arith.constant 0 : index
      %c0_48 = arith.constant 0 : index
      %88 = vector.load %arg6[%c2, %c0_47, %c0_48] : memref<5x16x16xf32, #tpu.memory_space<vmem>>, vector<1x16x16xf32>
      %89 = vector.shape_cast %88 : vector<1x16x16xf32> to vector<16x16xf32>
      %90 = arith.truncf %89 : vector<16x16xf32> to vector<16x16xbf16>
      %cst_49 = arith.constant dense<0.000000e+00> : vector<16x16xf32>
      %91 = tpu.matmul %73, %90, %cst_49 {dimension_numbers = #tpu.dot_dimension_numbers<[1], [0], [0], [1], [0, 0, 1, 1], [], []>} : vector<16x16xbf16>, vector<16x16xbf16>, vector<16x16xf32> -> vector<16x16xf32>
      %c2_50 = arith.constant 2 : index
      %c0_51 = arith.constant 0 : index
      %c0_52 = arith.constant 0 : index
      %92 = vector.load %arg6[%c2_50, %c0_51, %c0_52] : memref<5x16x16xf32, #tpu.memory_space<vmem>>, vector<1x16x16xf32>
      %93 = vector.shape_cast %92 : vector<1x16x16xf32> to vector<16x16xf32>
      %94 = vector.shape_cast %91 : vector<16x16xf32> to vector<1x16x16xf32>
      tpu.vector_store %arg6[%c2_50, %c0_51, %c0_52], %94 {strides = array<i32>} : memref<5x16x16xf32, #tpu.memory_space<vmem>>, vector<1x16x16xf32>,
      %c3 = arith.constant 3 : index
      %c0_53 = arith.constant 0 : index
      %c0_54 = arith.constant 0 : index
      %95 = vector.load %arg6[%c3, %c0_53, %c0_54] : memref<5x16x16xf32, #tpu.memory_space<vmem>>, vector<1x16x16xf32>
      %96 = vector.shape_cast %95 : vector<1x16x16xf32> to vector<16x16xf32>
      %97 = arith.truncf %96 : vector<16x16xf32> to vector<16x16xbf16>
      %cst_55 = arith.constant dense<0.000000e+00> : vector<16x16xf32>
      %98 = tpu.matmul %73, %97, %cst_55 {dimension_numbers = #tpu.dot_dimension_numbers<[1], [0], [0], [1], [0, 0, 1, 1], [], []>} : vector<16x16xbf16>, vector<16x16xbf16>, vector<16x16xf32> -> vector<16x16xf32>
      %c3_56 = arith.constant 3 : index
      %c0_57 = arith.constant 0 : index
      %c0_58 = arith.constant 0 : index
      %99 = vector.load %arg6[%c3_56, %c0_57, %c0_58] : memref<5x16x16xf32, #tpu.memory_space<vmem>>, vector<1x16x16xf32>
      %100 = vector.shape_cast %99 : vector<1x16x16xf32> to vector<16x16xf32>
      %101 = vector.shape_cast %98 : vector<16x16xf32> to vector<1x16x16xf32>
      tpu.vector_store %arg6[%c3_56, %c0_57, %c0_58], %101 {strides = array<i32>} : memref<5x16x16xf32, #tpu.memory_space<vmem>>, vector<1x16x16xf32>,
      %c4_59 = arith.constant 4 : index
      %c0_60 = arith.constant 0 : index
      %c0_61 = arith.constant 0 : index
      %102 = vector.load %arg6[%c4_59, %c0_60, %c0_61] : memref<5x16x16xf32, #tpu.memory_space<vmem>>, vector<1x16x16xf32>
      %103 = vector.shape_cast %102 : vector<1x16x16xf32> to vector<16x16xf32>
      %104 = arith.truncf %103 : vector<16x16xf32> to vector<16x16xbf16>
      %cst_62 = arith.constant dense<0.000000e+00> : vector<16x16xf32>
      %105 = tpu.matmul %73, %104, %cst_62 {dimension_numbers = #tpu.dot_dimension_numbers<[1], [0], [0], [1], [0, 0, 1, 1], [], []>} : vector<16x16xbf16>, vector<16x16xbf16>, vector<16x16xf32> -> vector<16x16xf32>
      %c4_63 = arith.constant 4 : index
      %c0_64 = arith.constant 0 : index
      %c0_65 = arith.constant 0 : index
      %106 = vector.load %arg6[%c4_63, %c0_64, %c0_65] : memref<5x16x16xf32, #tpu.memory_space<vmem>>, vector<1x16x16xf32>
      %107 = vector.shape_cast %106 : vector<1x16x16xf32> to vector<16x16xf32>
      %108 = vector.shape_cast %105 : vector<16x16xf32> to vector<1x16x16xf32>
      tpu.vector_store %arg6[%c4_63, %c0_64, %c0_65], %108 {strides = array<i32>} : memref<5x16x16xf32, #tpu.memory_space<vmem>>, vector<1x16x16xf32>,
    } else {
    }
    %c4_15 = arith.constant 4 : index
    %c0_16 = arith.constant 0 : index
    %c0_17 = arith.constant 0 : index
    %37 = vector.load %arg6[%c4_15, %c0_16, %c0_17] : memref<5x16x16xf32, #tpu.memory_space<vmem>>, vector<1x16x16xf32>
    %c0_18 = arith.constant 0 : index
    %c0_19 = arith.constant 0 : index
    %c0_20 = arith.constant 0 : index
    %c0_21 = arith.constant 0 : index
    %38 = vector.load %arg5[%c0_18, %c0_19, %c0_20, %c0_21] : memref<1x1x16x16xf32, #tpu.memory_space<vmem>>, vector<1x1x16x16xf32>
    %39 = vector.shape_cast %38 : vector<1x1x16x16xf32> to vector<1x16x16xf32>
    %40 = vector.shape_cast %37 : vector<1x16x16xf32> to vector<1x1x16x16xf32>
    tpu.vector_store %arg5[%c0_18, %c0_19, %c0_20, %c0_21], %40 {strides = array<i32>} : memref<1x1x16x16xf32, #tpu.memory_space<vmem>>, vector<1x1x16x16xf32>,
    %c0_22 = arith.constant 0 : index
    %c0_23 = arith.constant 0 : index
    %c0_24 = arith.constant 0 : index
    %41 = vector.load %arg6[%c0_22, %c0_23, %c0_24] : memref<5x16x16xf32, #tpu.memory_space<vmem>>, vector<4x16x16xf32>
    %42 = vector.broadcast %9 : f32 to vector<4x16x16xf32>
    %43 = arith.addf %41, %42 : vector<4x16x16xf32>
    %cst_25 = arith.constant 0.000000e+00 : f32
    %cst_26 = arith.constant 1.000000e+00 : f32
    %44 = vector.broadcast %cst_25 : f32 to vector<4x16x16xf32>
    %45 = arith.maximumf %44, %43 : vector<4x16x16xf32>
    %46 = vector.broadcast %cst_26 : f32 to vector<4x16x16xf32>
    %47 = arith.minimumf %46, %45 : vector<4x16x16xf32>
    %48 = vector.broadcast %12 : f32 to vector<4x16x16xf32>
    %49 = arith.mulf %47, %48 : vector<4x16x16xf32>
    %cst_27 = arith.constant 0.000000e+00 : f32
    %cst_28 = arith.constant 1.000000e+00 : f32
    %50 = vector.broadcast %cst_27 : f32 to vector<4x16x16xf32>
    %51 = arith.maximumf %50, %49 : vector<4x16x16xf32>
    %52 = vector.broadcast %cst_28 : f32 to vector<4x16x16xf32>
    %53 = arith.minimumf %52, %51 : vector<4x16x16xf32>
    %cst_29 = arith.constant 9.99999997E-7 : f32
    %54 = vector.broadcast %cst_29 : f32 to vector<4x16x16xf32>
    %55 = arith.maximumf %53, %54 : vector<4x16x16xf32>
    %56 = math.log %55 : vector<4x16x16xf32>
    %57 = vector.broadcast %15 : f32 to vector<4x16x16xf32>
    %58 = arith.mulf %57, %56 : vector<4x16x16xf32>
    %59 = math.exp %58 : vector<4x16x16xf32>
    %cst_30 = arith.constant 5.000000e-01 : f32
    %60 = arith.cmpf ole, %18, %cst_30 : f32
    %61 = arith.extui %60 : i1 to i32
    %c0_i32_31 = arith.constant 0 : i32
    %62 = arith.cmpi ne, %61, %c0_i32_31 : i32
    scf.if %62 {
      %c0_34 = arith.constant 0 : index
      %c0_35 = arith.constant 0 : index
      %c0_36 = arith.constant 0 : index
      %c0_37 = arith.constant 0 : index
      %66 = vector.load %arg4[%c0_34, %c0_35, %c0_36, %c0_37] : memref<1x4x16x16xf32, #tpu.memory_space<vmem>>, vector<1x4x16x16xf32>
      %67 = vector.shape_cast %66 : vector<1x4x16x16xf32> to vector<4x16x16xf32>
      %68 = vector.shape_cast %59 : vector<4x16x16xf32> to vector<1x4x16x16xf32>
      tpu.vector_store %arg4[%c0_34, %c0_35, %c0_36, %c0_37], %68 {strides = array<i32>} : memref<1x4x16x16xf32, #tpu.memory_space<vmem>>, vector<1x4x16x16xf32>,
    } else {
    }
    %cst_32 = arith.constant 5.000000e-01 : f32
    %63 = arith.cmpf ogt, %18, %cst_32 : f32
    %64 = arith.extui %63 : i1 to i32
    %c0_i32_33 = arith.constant 0 : i32
    %65 = arith.cmpi ne, %64, %c0_i32_33 : i32
    scf.if %65 {
      %66 = tpu.iota {dimensions = array<i32: 2>} : vector<1x1x16xi32>
      %67 = tpu.iota {dimensions = array<i32: 1>} : vector<1x16x1xi32>
      %c0_i32_34 = arith.constant 0 : i32
      %68 = vector.broadcast %c0_i32_34 : i32 to vector<1x1x16xi32>
      %69 = arith.cmpi eq, %66, %68 : vector<1x1x16xi32>
      %70 = arith.extui %69 : vector<1x1x16xi1> to vector<1x1x16xi32>
      %71 = arith.sitofp %70 : vector<1x1x16xi32> to vector<1x1x16xf32>
      %c15_i32 = arith.constant 15 : i32
      %72 = vector.broadcast %c15_i32 : i32 to vector<1x1x16xi32>
      %73 = arith.cmpi eq, %66, %72 : vector<1x1x16xi32>
      %74 = arith.extui %73 : vector<1x1x16xi1> to vector<1x1x16xi32>
      %75 = arith.sitofp %74 : vector<1x1x16xi32> to vector<1x1x16xf32>
      %c0_i32_35 = arith.constant 0 : i32
      %76 = vector.broadcast %c0_i32_35 : i32 to vector<1x16x1xi32>
      %77 = arith.cmpi eq, %67, %76 : vector<1x16x1xi32>
      %78 = arith.extui %77 : vector<1x16x1xi1> to vector<1x16x1xi32>
      %79 = arith.sitofp %78 : vector<1x16x1xi32> to vector<1x16x1xf32>
      %c15_i32_36 = arith.constant 15 : i32
      %80 = vector.broadcast %c15_i32_36 : i32 to vector<1x16x1xi32>
      %81 = arith.cmpi eq, %67, %80 : vector<1x16x1xi32>
      %82 = arith.extui %81 : vector<1x16x1xi1> to vector<1x16x1xi32>
      %83 = arith.sitofp %82 : vector<1x16x1xi32> to vector<1x16x1xf32>
      %84 = vector.shape_cast %59 : vector<4x16x16xf32> to vector<64x16xf32>
      %c1_i32_37 = arith.constant 1 : i32
      %85 = tpu.dynamic_rotate %84 by %c1_i32_37 dim 1 : vector<64x16xf32>, i32 -> vector<64x16xf32>
      %c15_i32_38 = arith.constant 15 : i32
      %86 = tpu.dynamic_rotate %84 by %c15_i32_38 dim 1 : vector<64x16xf32>, i32 -> vector<64x16xf32>
      %87 = arith.addf %85, %86 : vector<64x16xf32>
      %88 = vector.shape_cast %87 : vector<64x16xf32> to vector<4x16x16xf32>
      %89 = vector.broadcast %24 : f32 to vector<4x16x16xf32>
      %90 = arith.mulf %89, %59 : vector<4x16x16xf32>
      %91 = vector.broadcast %21 : f32 to vector<4x16x16xf32>
      %92 = arith.mulf %91, %88 : vector<4x16x16xf32>
      %93 = arith.addf %90, %92 : vector<4x16x16xf32>
      %94 = vector.broadcast %21 : f32 to vector<1x1x16xf32>
      %95 = arith.mulf %94, %71 : vector<1x1x16xf32>
      %96 = vector.extract_strided_slice %59 {offsets = [0, 0, 1], sizes = [4, 16, 1], strides = [1, 1, 1]} : vector<4x16x16xf32> to vector<4x16x1xf32>
      %97 = vector.extract_strided_slice %59 {offsets = [0, 0, 15], sizes = [4, 16, 1], strides = [1, 1, 1]} : vector<4x16x16xf32> to vector<4x16x1xf32>
      %98 = arith.subf %96, %97 : vector<4x16x1xf32>
      %99 = vector.broadcast %95 : vector<1x1x16xf32> to vector<4x16x16xf32>
      %100 = vector.broadcast %98 : vector<4x16x1xf32> to vector<4x16x16xf32>
      %101 = arith.mulf %99, %100 : vector<4x16x16xf32>
      %102 = arith.addf %93, %101 : vector<4x16x16xf32>
      %103 = vector.broadcast %21 : f32 to vector<1x1x16xf32>
      %104 = arith.mulf %103, %75 : vector<1x1x16xf32>
      %105 = vector.extract_strided_slice %59 {offsets = [0, 0, 14], sizes = [4, 16, 1], strides = [1, 1, 1]} : vector<4x16x16xf32> to vector<4x16x1xf32>
      %106 = vector.extract_strided_slice %59 {offsets = [0, 0, 0], sizes = [4, 16, 1], strides = [1, 1, 1]} : vector<4x16x16xf32> to vector<4x16x1xf32>
      %107 = arith.subf %105, %106 : vector<4x16x1xf32>
      %108 = vector.broadcast %104 : vector<1x1x16xf32> to vector<4x16x16xf32>
      %109 = vector.broadcast %107 : vector<4x16x1xf32> to vector<4x16x16xf32>
      %110 = arith.mulf %108, %109 : vector<4x16x16xf32>
      %111 = arith.addf %102, %110 : vector<4x16x16xf32>
      %112 = vector.shape_cast %111 : vector<4x16x16xf32> to vector<64x16xf32>
      %c1_i32_39 = arith.constant 1 : i32
      %113 = tpu.dynamic_rotate %112 by %c1_i32_39 dim 0 : vector<64x16xf32>, i32 -> vector<64x16xf32>
      %114 = vector.shape_cast %113 : vector<64x16xf32> to vector<4x16x16xf32>
      %c63_i32 = arith.constant 63 : i32
      %115 = tpu.dynamic_rotate %112 by %c63_i32 dim 0 : vector<64x16xf32>, i32 -> vector<64x16xf32>
      %116 = vector.shape_cast %115 : vector<64x16xf32> to vector<4x16x16xf32>
      %117 = vector.broadcast %24 : f32 to vector<4x16x16xf32>
      %118 = arith.mulf %117, %111 : vector<4x16x16xf32>
      %119 = arith.addf %114, %116 : vector<4x16x16xf32>
      %120 = vector.broadcast %21 : f32 to vector<4x16x16xf32>
      %121 = arith.mulf %120, %119 : vector<4x16x16xf32>
      %122 = arith.addf %118, %121 : vector<4x16x16xf32>
      %123 = vector.broadcast %21 : f32 to vector<1x16x1xf32>
      %124 = arith.mulf %123, %79 : vector<1x16x1xf32>
      %125 = vector.extract_strided_slice %111 {offsets = [0, 1, 0], sizes = [4, 1, 16], strides = [1, 1, 1]} : vector<4x16x16xf32> to vector<4x1x16xf32>
      %126 = vector.extract_strided_slice %114 {offsets = [0, 0, 0], sizes = [4, 1, 16], strides = [1, 1, 1]} : vector<4x16x16xf32> to vector<4x1x16xf32>
      %127 = arith.subf %125, %126 : vector<4x1x16xf32>
      %128 = vector.broadcast %124 : vector<1x16x1xf32> to vector<4x16x16xf32>
      %129 = vector.broadcast %127 : vector<4x1x16xf32> to vector<4x16x16xf32>
      %130 = arith.mulf %128, %129 : vector<4x16x16xf32>
      %131 = arith.addf %122, %130 : vector<4x16x16xf32>
      %132 = vector.broadcast %21 : f32 to vector<1x16x1xf32>
      %133 = arith.mulf %132, %83 : vector<1x16x1xf32>
      %134 = vector.extract_strided_slice %111 {offsets = [0, 14, 0], sizes = [4, 1, 16], strides = [1, 1, 1]} : vector<4x16x16xf32> to vector<4x1x16xf32>
      %135 = vector.extract_strided_slice %116 {offsets = [0, 15, 0], sizes = [4, 1, 16], strides = [1, 1, 1]} : vector<4x16x16xf32> to vector<4x1x16xf32>
      %136 = arith.subf %134, %135 : vector<4x1x16xf32>
      %137 = vector.broadcast %133 : vector<1x16x1xf32> to vector<4x16x16xf32>
      %138 = vector.broadcast %136 : vector<4x1x16xf32> to vector<4x16x16xf32>
      %139 = arith.mulf %137, %138 : vector<4x16x16xf32>
      %140 = arith.addf %131, %139 : vector<4x16x16xf32>
      %c0_40 = arith.constant 0 : index
      %c0_41 = arith.constant 0 : index
      %c0_42 = arith.constant 0 : index
      %c0_43 = arith.constant 0 : index
      %141 = vector.load %arg4[%c0_40, %c0_41, %c0_42, %c0_43] : memref<1x4x16x16xf32, #tpu.memory_space<vmem>>, vector<1x4x16x16xf32>
      %142 = vector.shape_cast %141 : vector<1x4x16x16xf32> to vector<4x16x16xf32>
      %143 = vector.shape_cast %140 : vector<4x16x16xf32> to vector<1x4x16x16xf32>
      tpu.vector_store %arg4[%c0_40, %c0_41, %c0_42, %c0_43], %143 {strides = array<i32>} : memref<1x4x16x16xf32, #tpu.memory_space<vmem>>, vector<1x4x16x16xf32>,
    } else {
    }
    return
  }
  func.func @transform_0(%arg0: i32) -> i32 {
    %c0_i32 = arith.constant 0 : i32
    %c0_i32_0 = arith.constant 0 : i32
    return %c0_i32 : i32
  }
  func.func @transform_1(%arg0: i32) -> (i32, i32, i32, i32) {
    %c0_i32 = arith.constant 0 : i32
    %c0_i32_0 = arith.constant 0 : i32
    %c0_i32_1 = arith.constant 0 : i32
    %c0_i32_2 = arith.constant 0 : i32
    return %arg0, %c0_i32, %c0_i32_0, %c0_i32_1 : i32, i32, i32, i32
  }
  func.func @transform_2(%arg0: i32) -> (i32, i32, i32, i32) {
    %c0_i32 = arith.constant 0 : i32
    %c0_i32_0 = arith.constant 0 : i32
    %c0_i32_1 = arith.constant 0 : i32
    %c0_i32_2 = arith.constant 0 : i32
    return %arg0, %c0_i32, %c0_i32_0, %c0_i32_1 : i32, i32, i32, i32
  }
  func.func @transform_3(%arg0: i32) -> (i32, i32, i32, i32) {
    %c0_i32 = arith.constant 0 : i32
    %c0_i32_0 = arith.constant 0 : i32
    %c0_i32_1 = arith.constant 0 : i32
    %c0_i32_2 = arith.constant 0 : i32
    return %arg0, %c0_i32, %c0_i32_0, %c0_i32_1 : i32, i32, i32, i32
  }
  func.func @transform_4(%arg0: i32) -> (i32, i32, i32, i32) {
    %c0_i32 = arith.constant 0 : i32
    %c0_i32_0 = arith.constant 0 : i32
    %c0_i32_1 = arith.constant 0 : i32
    %c0_i32_2 = arith.constant 0 : i32
    return %arg0, %c0_i32, %c0_i32_0, %c0_i32_1 : i32, i32, i32, i32
  }
}

</mosaic_0001>

<llo_original>
// kernel: tpu_custom_call.1
$region0: #{tpu_custom_call.1}
  #allocation0 [shape = 'u32[]', space=smem, size = 0x4, offset = 0x4, fixed_abs, tag = 'smem constant byte address 0x4 - core index']
  #allocation1 [shape = 'u32[72,128]{1,0:T(1,128)}', space=vmem, size = 0x9000, scoped, tag = 'internal scratch']
  #allocation2 [shape = 'f32[5,16,16]{2,1,0:T(8,128)}', space=vmem, size = 0xa000, scoped, tag = 'scratch operand']
  %s0 = inlined_call_operand.hbm [shape: f32[32], index: 0, kind: input, shape index: {}]
  %s1 = inlined_call_operand.hbm [shape: f32[4,4,16,16], index: 1, kind: input, shape index: {}]
  %s2 = inlined_call_operand.hbm [shape: f32[4,1,16,16], index: 2, kind: input, shape index: {}]
  %s3 = inlined_call_operand.hbm [shape: f32[4,4,16,16], index: 3, kind: output, shape index: {0}]
  %s4 = inlined_call_operand.hbm [shape: f32[4,1,16,16], index: 4, kind: output, shape index: {1}]
  %5 = xla_tuple %s3, %s4
  %s6 = sld [smem:[#allocation0]]
  $region81: #{tpu_custom_call.1} parent=0
    _
  %s8 = ssub.s32 1, %s6
  %s9 = scalar_select 0, %s8, %s6
  $region1: #{tpu_custom_call.1} parent=0
    #allocation3 [shape = 'u8[512]{0}', space=smem, size = 0x200, scoped, tag = 'input window, operand 0, single buffered']
    #allocation4 [shape = 's32[2]{0}', space=sflag, size = 0x8, scoped, tag = 'scoped memory for tpu_custom_call.1']
    #allocation5 [shape = 's32[2]{0}', space=sflag, size = 0x8, scoped, tag = 'scoped memory for tpu_custom_call.1']
    #allocation6 [shape = 's32[2]{0}', space=sflag, size = 0x8, scoped, tag = 'scoped memory for tpu_custom_call.1']
    #allocation7 [shape = 'u8[65536]{0}', space=vmem, size = 0x10000, scoped, tag = 'input window, operand 1']
    #allocation8 [shape = 'u8[16384]{0}', space=vmem, size = 0x4000, scoped, tag = 'input window, operand 2']
    #allocation9 [shape = 's32[2]{0}', space=sflag, size = 0x8, scoped, tag = 'scoped memory for tpu_custom_call.1']
    #allocation10 [shape = 'u8[65536]{0}', space=vmem, size = 0x10000, scoped, tag = 'output window, operand 0']
    #allocation11 [shape = 'u8[16384]{0}', space=vmem, size = 0x4000, scoped, tag = 'output window, operand 1']
    #allocation12 [shape = 's32[2]{0}', space=sflag, size = 0x8, scoped, tag = 'scoped memory for tpu_custom_call.1']
    %10 = vsyncpa [#allocation6], 0
    %11 = vsyncpa [#allocation4], 0
    %s12 = scalar_lea.sflag [#allocation4], 1
    %13 = vsyncpa %s12, 0
    %14 = vsyncpa [#allocation9], 0
    %s15 = scalar_lea.sflag [#allocation9], 1
    %16 = vsyncpa %s15, 0
    %17 = vsyncpa [#allocation5], 0
    %s18 = scalar_lea.sflag [#allocation5], 1
    %19 = vsyncpa %s18, 0
    %20 = vsyncpa [#allocation12], 0
    %s21 = scalar_lea.sflag [#allocation12], 1
    %22 = vsyncpa %s21, 0
    loop: start=0, step=1, limit=6
    $region2: #{tpu_custom_call.1} parent=1 // loop_pre_header
      _
    $region3: #{tpu_custom_call.1} parent=1 // loop_header
      %s24 = sphi 0, %s28
      %p25 = scmp.ge.s32.totalorder %s24, 6
      %s32 = sphi 0, %s32
      %s34 = sphi 0, %s32
      %s35 = sphi 0, %s34
      %s49 = sphi 0, %s35
      %s55 = sphi 0, %s57
      %s58 = sphi 0, %s55
      %s59 = sphi 0, %s58
      %s75 = sphi 0, %s59
      %s81 = sphi 0, %s83
      %s84 = sphi 0, %s81
      %s85 = sphi 0, %s84
      %s101 = sphi 0, %s85
      %s107 = sphi 0, %s109
      %s110 = sphi 0, %s107
      %s111 = sphi 0, %s110
      %s127 = sphi 0, %s111
      %s133 = sphi 0, %s135
      %s136 = sphi 0, %s133
      %s137 = sphi 0, %s136
      %s153 = sphi 0, %s137
    $region4: #{tpu_custom_call.1} parent=1 // loop_header_branch
      %27 = sbr.rel (%p25) target = $region8
    $region5: #{tpu_custom_call.1} parent=1 // loop_body
      %s29 = ssub.s32 %s24, 1
      %s30 = ssub.s32 %s24, 2
      %s31 = sadd.s32 %s24, 1
      %s33 = sadd.s32 %s32, 1
      %p36 = scmp.eq.s32.totalorder %s24, 3
      %p37 = scmp.ne.s32.totalorder %s32, %s34
      %p38 = scmp.eq.s32.totalorder %s24, 0
      %p39 = por %p37, %p38
      %p40 = scmp.ne.s32.totalorder %s32, %s34
      %p41 = scmp.eq.s32.totalorder %s29, 3
      %p42 = por %p40, %p41
      %p43 = scmp.ne.s32.totalorder %s34, %s35
      %p44 = scmp.eq.s32.totalorder %s29, 0
      %p45 = por %p43, %p44
      %p46 = scmp.ne.s32.totalorder %s34, %s35
      %p47 = scmp.eq.s32.totalorder %s30, 3
      %p48 = por %p46, %p47
      %p50 = scmp.ne.s32.totalorder %s35, %s49
      %p51 = scmp.eq.s32.totalorder %s30, 0
      %p52 = por %p50, %p51
      %s53 = ssub.s32 %s24, %s31
      %p54 = scmp.eq.s32.totalorder %s53, 0
      %s56 = sadd.s32 %s55, 1
      %s57 = scalar_select %p54, %s55, %s56
      %p60 = pneg %p54
      %p61 = scmp.eq.s32.totalorder %s24, 3
      %p62 = por %p60, %p61
      %p63 = scmp.ne.s32.totalorder %s55, %s58
      %p64 = scmp.eq.s32.totalorder %s24, 0
      %p65 = por %p63, %p64
      %p66 = scmp.ne.s32.totalorder %s55, %s58
      %p67 = scmp.eq.s32.totalorder %s29, 3
      %p68 = por %p66, %p67
      %p69 = scmp.ne.s32.totalorder %s58, %s59
      %p70 = scmp.eq.s32.totalorder %s29, 0
      %p71 = por %p69, %p70
      %p72 = scmp.ne.s32.totalorder %s58, %s59
      %p73 = scmp.eq.s32.totalorder %s30, 3
      %p74 = por %p72, %p73
      %p76 = scmp.ne.s32.totalorder %s59, %s75
      %p77 = scmp.eq.s32.totalorder %s30, 0
      %p78 = por %p76, %p77
      %s79 = ssub.s32 %s24, %s31
      %p80 = scmp.eq.s32.totalorder %s79, 0
      %s82 = sadd.s32 %s81, 1
      %s83 = scalar_select %p80, %s81, %s82
      %p86 = pneg %p80
      %p87 = scmp.eq.s32.totalorder %s24, 3
      %p88 = por %p86, %p87
      %p89 = scmp.ne.s32.totalorder %s81, %s84
      %p90 = scmp.eq.s32.totalorder %s24, 0
      %p91 = por %p89, %p90
      %p92 = scmp.ne.s32.totalorder %s81, %s84
      %p93 = scmp.eq.s32.totalorder %s29, 3
      %p94 = por %p92, %p93
      %p95 = scmp.ne.s32.totalorder %s84, %s85
      %p96 = scmp.eq.s32.totalorder %s29, 0
      %p97 = por %p95, %p96
      %p98 = scmp.ne.s32.totalorder %s84, %s85
      %p99 = scmp.eq.s32.totalorder %s30, 3
      %p100 = por %p98, %p99
      %p102 = scmp.ne.s32.totalorder %s85, %s101
      %p103 = scmp.eq.s32.totalorder %s30, 0
      %p104 = por %p102, %p103
      %s105 = ssub.s32 %s24, %s31
      %p106 = scmp.eq.s32.totalorder %s105, 0
      %s108 = sadd.s32 %s107, 1
      %s109 = scalar_select %p106, %s107, %s108
      %p112 = pneg %p106
      %p113 = scmp.eq.s32.totalorder %s24, 3
      %p114 = por %p112, %p113
      %p115 = scmp.ne.s32.totalorder %s107, %s110
      %p116 = scmp.eq.s32.totalorder %s24, 0
      %p117 = por %p115, %p116
      %p118 = scmp.ne.s32.totalorder %s107, %s110
      %p119 = scmp.eq.s32.totalorder %s29, 3
      %p120 = por %p118, %p119
      %p121 = scmp.ne.s32.totalorder %s110, %s111
      %p122 = scmp.eq.s32.totalorder %s29, 0
      %p123 = por %p121, %p122
      %p124 = scmp.ne.s32.totalorder %s110, %s111
      %p125 = scmp.eq.s32.totalorder %s30, 3
      %p126 = por %p124, %p125
      %p128 = scmp.ne.s32.totalorder %s111, %s127
      %p129 = scmp.eq.s32.totalorder %s30, 0
      %p130 = por %p128, %p129
      %s131 = ssub.s32 %s24, %s31
      %p132 = scmp.eq.s32.totalorder %s131, 0
      %s134 = sadd.s32 %s133, 1
      %s135 = scalar_select %p132, %s133, %s134
      %p138 = pneg %p132
      %p139 = scmp.eq.s32.totalorder %s24, 3
      %p140 = por %p138, %p139
      %p141 = scmp.ne.s32.totalorder %s133, %s136
      %p142 = scmp.eq.s32.totalorder %s24, 0
      %p143 = por %p141, %p142
      %p144 = scmp.ne.s32.totalorder %s133, %s136
      %p145 = scmp.eq.s32.totalorder %s29, 3
      %p146 = por %p144, %p145
      %p147 = scmp.ne.s32.totalorder %s136, %s137
      %p148 = scmp.eq.s32.totalorder %s29, 0
      %p149 = por %p147, %p148
      %p150 = scmp.ne.s32.totalorder %s136, %s137
      %p151 = scmp.eq.s32.totalorder %s30, 3
      %p152 = por %p150, %p151
      %p154 = scmp.ne.s32.totalorder %s137, %s153
      %p155 = scmp.eq.s32.totalorder %s30, 0
      %p156 = por %p154, %p155
      %p157 = scmp.le.s32.totalorder 1, %s24
      %p158 = scmp.lt.s32.totalorder %s24, 5
      %p159 = pnand %p157, %p158
      %p160 = pneg %p159
      // Predicated region
      $region9: #{tpu_custom_call.1} parent=5 // pred_check
        _
      $region10: #{tpu_custom_call.1} parent=5 // pred_check_branch
        %162 = sbr.rel (%p159) target = $region12
      $region11: #{tpu_custom_call.1} parent=5 // pred_region
        %s163 = ssub.s32 %s24, 1
        // Predicated region
        $region13: #{tpu_custom_call.1} parent=11 // pred_check
          %p164 = pneg %p45
        $region14: #{tpu_custom_call.1} parent=11 // pred_check_branch
          %166 = sbr.rel (%p164) target = $region16
        $region15: #{tpu_custom_call.1} parent=11 // pred_region
          %168 = vsyncadd [#allocation6], 0
          %s170 = sshll.u32 %s0, 4
          %s171 = int_to_ptr.hbm [resolvable:$true] %s170
          %173 = dma.hbm_to_smem %s171, 16, [#allocation3], [#allocation6]
        $region16: #{tpu_custom_call.1} parent=11 // pred_fallthru
          _
      $region12: #{tpu_custom_call.1} parent=5 // pred_fallthru
        _
      %p174 = scmp.lt.s32.totalorder %s24, 4
      // Predicated region
      $region17: #{tpu_custom_call.1} parent=5 // pred_check
        %p175 = pneg %p174
      $region18: #{tpu_custom_call.1} parent=5 // pred_check_branch
        %177 = sbr.rel (%p175) target = $region20
      $region19: #{tpu_custom_call.1} parent=5 // pred_region
        // Predicated region
        $region21: #{tpu_custom_call.1} parent=19 // pred_check
          %p178 = pneg %p65
        $region22: #{tpu_custom_call.1} parent=19 // pred_check_branch
          %180 = sbr.rel (%p178) target = $region24
        $region23: #{tpu_custom_call.1} parent=19 // pred_region
          %s181 = sand.u32 %s55, 1
          %s182 = scalar_lea.sflag [#allocation4], %s181
          %s183 = sand.u32 %s55, 1
          %s184 = smul.addr %s183, 64
          %s185 = scalar_lea.vmem [#allocation7], %s184
          %187 = vsyncadd %s182, 0
          %s188 = smul.addr %s24, 8
          %s189 = smul.addr %s188, 8
          %s190 = scalar_lea.hbm %s1, %s189
          %s191 = sshll.u32 %s190, 4
          %s192 = int_to_ptr.hbm [resolvable:$true] %s191
          %s193 = sshll.u32 %s185, 4
          %s194 = int_to_ptr.vmem [resolvable:$true] %s193
          %199 = dma.hbm_to_vmem [thread:$0]  %s192, 1024, %s194, %s182, 128, 128, 8
        $region24: #{tpu_custom_call.1} parent=19 // pred_fallthru
          _
        // Predicated region
        $region25: #{tpu_custom_call.1} parent=19 // pred_check
          %p200 = pneg %p91
        $region26: #{tpu_custom_call.1} parent=19 // pred_check_branch
          %202 = sbr.rel (%p200) target = $region28
        $region27: #{tpu_custom_call.1} parent=19 // pred_region
          %s203 = sand.u32 %s81, 1
          %s204 = scalar_lea.sflag [#allocation9], %s203
          %s205 = sand.u32 %s81, 1
          %s206 = smul.addr %s205, 16
          %s207 = scalar_lea.vmem [#allocation8], %s206
          %209 = vsyncadd %s204, 0
          %s210 = smul.addr %s24, 2
          %s211 = smul.addr %s210, 8
          %s212 = scalar_lea.hbm %s2, %s211
          %s213 = sshll.u32 %s212, 4
          %s214 = int_to_ptr.hbm [resolvable:$true] %s213
          %s215 = sshll.u32 %s207, 4
          %s216 = int_to_ptr.vmem [resolvable:$true] %s215
          %221 = dma.hbm_to_vmem [thread:$0]  %s214, 256, %s216, %s204, 128, 128, 8
        $region28: #{tpu_custom_call.1} parent=19 // pred_fallthru
          _
      $region20: #{tpu_custom_call.1} parent=5 // pred_fallthru
        _
      %p222 = scmp.le.s32.totalorder 1, %s24
      %p223 = scmp.lt.s32.totalorder %s24, 5
      %p224 = pnand %p222, %p223
      %p225 = pneg %p224
      // Predicated region
      $region29: #{tpu_custom_call.1} parent=5 // pred_check
        _
      $region30: #{tpu_custom_call.1} parent=5 // pred_check_branch
        %227 = sbr.rel (%p224) target = $region32
      $region31: #{tpu_custom_call.1} parent=5 // pred_region
        %s228 = ssub.s32 %s24, 1
        // Predicated region
        $region33: #{tpu_custom_call.1} parent=31 // pred_check
          %p229 = pneg %p45
        $region34: #{tpu_custom_call.1} parent=31 // pred_check_branch
          %231 = sbr.rel (%p229) target = $region36
        $region35: #{tpu_custom_call.1} parent=31 // pred_region
          %233 = dma.done [#allocation6], 16
        $region36: #{tpu_custom_call.1} parent=31 // pred_fallthru
          _
        %s234 = sand.u32 %s58, 1
        %s235 = scalar_lea.sflag [#allocation4], %s234
        %s236 = sand.u32 %s58, 1
        %s237 = smul.addr %s236, 64
        %s238 = scalar_lea.vmem [#allocation7], %s237
        // Predicated region
        $region37: #{tpu_custom_call.1} parent=31 // pred_check
          %p239 = pneg %p71
        $region38: #{tpu_custom_call.1} parent=31 // pred_check_branch
          %241 = sbr.rel (%p239) target = $region40
        $region39: #{tpu_custom_call.1} parent=31 // pred_region
          %243 = dma.done %s235, 1024
        $region40: #{tpu_custom_call.1} parent=31 // pred_fallthru
          _
        %s244 = sand.u32 %s84, 1
        %s245 = scalar_lea.sflag [#allocation9], %s244
        %s246 = sand.u32 %s84, 1
        %s247 = smul.addr %s246, 16
        %s248 = scalar_lea.vmem [#allocation8], %s247
        // Predicated region
        $region41: #{tpu_custom_call.1} parent=31 // pred_check
          %p249 = pneg %p97
        $region42: #{tpu_custom_call.1} parent=31 // pred_check_branch
          %251 = sbr.rel (%p249) target = $region44
        $region43: #{tpu_custom_call.1} parent=31 // pred_region
          %253 = dma.done %s245, 256
        $region44: #{tpu_custom_call.1} parent=31 // pred_fallthru
          _
        %254 = sfence
        %p255 = pneg %p45
        %p256 = pneg %p42
        %s257 = sand.u32 %s58, 1
        %s258 = scalar_lea.sflag [#allocation4], %s257
        %s259 = sand.u32 %s58, 1
        %s260 = smul.addr %s259, 64
        %s261 = scalar_lea.vmem [#allocation7], %s260
        %p262 = pneg %p71
        %p263 = pneg %p68
        %s264 = sand.u32 %s84, 1
        %s265 = scalar_lea.sflag [#allocation9], %s264
        %s266 = sand.u32 %s84, 1
        %s267 = smul.addr %s266, 16
        %s268 = scalar_lea.vmem [#allocation8], %s267
        %p269 = pneg %p97
        %p270 = pneg %p94
        %p271 = pneg %p123
        %p272 = pneg %p120
        %s273 = sand.u32 %s110, 1
        %s274 = scalar_lea.sflag [#allocation5], %s273
        %s275 = sand.u32 %s110, 1
        %s276 = smul.addr %s275, 64
        %s277 = scalar_lea.vmem [#allocation10], %s276
        %p278 = pneg %p149
        %p279 = pneg %p146
        %s280 = sand.u32 %s136, 1
        %s281 = scalar_lea.sflag [#allocation12], %s280
        %s282 = sand.u32 %s136, 1
        %s283 = smul.addr %s282, 16
        %s284 = scalar_lea.vmem [#allocation11], %s283
        %s286 = smul.u32 %s29, 8
        %s287 = sld [smem:[#allocation3 + %s286]]
        %s288 = sadd.s32 %s286, 1
        %s289 = sld [smem:[#allocation3 + %s288]]
        %s290 = sadd.s32 %s286, 2
        %s291 = sld [smem:[#allocation3 + %s290]]
        %s292 = sadd.s32 %s286, 3
        %s293 = sld [smem:[#allocation3 + %s292]]
        %s294 = sadd.s32 %s286, 4
        %s295 = sld [smem:[#allocation3 + %s294]]
        %s296 = sadd.s32 %s286, 5
        %s297 = sld [smem:[#allocation3 + %s296]]
        %s298 = sadd.s32 %s286, 6
        %s299 = sld [smem:[#allocation3 + %s298]]
        %s300 = sadd.s32 %s286, 7
        %s301 = sld [smem:[#allocation3 + %s300]]
        %v302 = vld [vmem:[%s238] sm:$0xff]
        %v303 = vld [vmem:[%s238 + $0x8] sm:$0xff]
        %v304 = vld [vmem:[%s238 + $0x10] sm:$0xff]
        %v305 = vld [vmem:[%s238 + $0x18] sm:$0xff]
        %v306 = vld [vmem:[%s238 + $0x20] sm:$0xff]
        %v307 = vld [vmem:[%s238 + $0x28] sm:$0xff]
        %v308 = vld [vmem:[%s238 + $0x30] sm:$0xff]
        %v309 = vld [vmem:[%s238 + $0x38] sm:$0xff]
        %vm310 = vcmask 130048
        %311 = vst.msk [vmem:[#allocation2] sm:$0xff] %vm310, %v302
        %312 = vst.msk [vmem:[#allocation2 + $0x8] sm:$0xff] %vm310, %v303
        %313 = vst.msk [vmem:[#allocation2 + $0x10] sm:$0xff] %vm310, %v304
        %314 = vst.msk [vmem:[#allocation2 + $0x18] sm:$0xff] %vm310, %v305
        %315 = vst.msk [vmem:[#allocation2 + $0x20] sm:$0xff] %vm310, %v306
        %316 = vst.msk [vmem:[#allocation2 + $0x28] sm:$0xff] %vm310, %v307
        %317 = vst.msk [vmem:[#allocation2 + $0x30] sm:$0xff] %vm310, %v308
        %318 = vst.msk [vmem:[#allocation2 + $0x38] sm:$0xff] %vm310, %v309
        %v319 = vld [vmem:[%s248] sm:$0xff]
        %v320 = vld [vmem:[%s248 + $0x8] sm:$0xff]
        %s321 = scalar_lea.vmem [#allocation2], 64
        %322 = vst.msk [vmem:[%s321] sm:$0xff] %vm310, %v319
        %323 = vst.msk [vmem:[%s321 + $0x8] sm:$0xff] %vm310, %v320
        %p324 = scmp.gt.f32.partialorder %s287, 0.5
        // Predicated region
        $region45: #{tpu_custom_call.1} parent=31 // pred_check
          %p325 = pneg %p324
        $region46: #{tpu_custom_call.1} parent=31 // pred_check_branch
          %327 = sbr.rel (%p325) target = $region48
        $region47: #{tpu_custom_call.1} parent=31 // pred_region
          %v328 = vlaneseq
          %v329 = vshrl.u32 %v328, 7
          %v330 = vadd.s32 %v329, 8
          %v331 = vlaneseq
          %v332 = vand.u32 %v331, 127
          %v333 = vadd.s32 %v329, %v332
          %v334 = vadd.s32 %v330, %v332
          %vm335 = vcmp.eq.s32.totalorder %v333, 15
          %vm336 = vcmp.eq.s32.totalorder %v334, 15
          %v337 = vsel %vm335, 1, 0
          %v338 = vsel %vm336, 1, 0
          %v339 = vcvt.s32.f32 %v337
          %v340 = vcvt.s32.f32 %v338
          %v341 = vpack.c.bf16 %v340, %v339
          %v342 = vld [vmem:[#allocation2] sm:$0xff]
          %v343 = vld [vmem:[#allocation2 + $0x8] sm:$0xff]
          %v344 = vld [vmem:[#allocation2 + $0x10] sm:$0xff]
          %v345 = vld [vmem:[#allocation2 + $0x18] sm:$0xff]
          %v346 = vld [vmem:[#allocation2 + $0x20] sm:$0xff]
          %v347 = vld [vmem:[#allocation2 + $0x28] sm:$0xff]
          %v348 = vld [vmem:[#allocation2 + $0x30] sm:$0xff]
          %v349 = vld [vmem:[#allocation2 + $0x38] sm:$0xff]
          %v350 = vld [vmem:[#allocation2 + $0x40] sm:$0xff]
          %v351 = vld [vmem:[#allocation2 + $0x48] sm:$0xff]
          %v352 = vpack.c.bf16 %v343, %v342
          %v353 = vpack.c.bf16 %v345, %v344
          %v354 = vpack.c.bf16 %v347, %v346
          %v355 = vpack.c.bf16 %v349, %v348
          %v356 = vpack.c.bf16 %v351, %v350
          %v358 = vsel %vm310, %v352, 0
          %v361 = vsel %vm310, %v353, 0
          %v364 = vsel %vm310, %v354, 0
          %v367 = vsel %vm310, %v355, 0
          %v370 = vsel %vm310, %v356, 0
          %372 = vmatpush.bf16.msra.mxu0 0
          %373 = vmatpush.bf16.msra.mxu0 0
          %374 = vmatpush.bf16.msra.mxu0 0
          %375 = vmatpush.bf16.msra.mxu0 0
          %376 = vmatpush.bf16.msra.mxu0 0
          %377 = vmatpush.bf16.msra.mxu0 0
          %378 = vmatpush.bf16.msra.mxu0 0
          %379 = vmatpush.bf16.msra.mxu0 %v341
          %380 = vmatmul.bf16.gmra.mxu0 %v358
          %v381 = vpop.f32.mrf.mxu0
          %v382 = vadd.f32 0.0, %v381
          %v383 = vpop.f32.mrf.mxu0
          %v384 = vadd.f32 0.0, %v383
          %385 = vmatmul.bf16.gmra.mxu0 %v361
          %v386 = vpop.f32.mrf.mxu0
          %v387 = vadd.f32 0.0, %v386
          %v388 = vpop.f32.mrf.mxu0
          %v389 = vadd.f32 0.0, %v388
          %390 = vmatmul.bf16.gmra.mxu0 %v364
          %v391 = vpop.f32.mrf.mxu0
          %v392 = vadd.f32 0.0, %v391
          %v393 = vpop.f32.mrf.mxu0
          %v394 = vadd.f32 0.0, %v393
          %395 = vmatmul.bf16.gmra.mxu0 %v367
          %v396 = vpop.f32.mrf.mxu0
          %v397 = vadd.f32 0.0, %v396
          %v398 = vpop.f32.mrf.mxu0
          %v399 = vadd.f32 0.0, %v398
          %400 = vmatmul.bf16.gmra.mxu0 %v370
          %v401 = vpop.f32.mrf.mxu0
          %v402 = vadd.f32 0.0, %v401
          %v403 = vpop.f32.mrf.mxu0
          %v404 = vadd.f32 0.0, %v403
          %405 = vdwg.mxu0
          %406 = vst.msk [vmem:[#allocation2] sm:$0xff] %vm310, %v382
          %407 = vst.msk [vmem:[#allocation2 + $0x8] sm:$0xff] %vm310, %v384
          %408 = vst.msk [vmem:[#allocation2 + $0x10] sm:$0xff] %vm310, %v387
          %409 = vst.msk [vmem:[#allocation2 + $0x18] sm:$0xff] %vm310, %v389
          %410 = vst.msk [vmem:[#allocation2 + $0x20] sm:$0xff] %vm310, %v392
          %411 = vst.msk [vmem:[#allocation2 + $0x28] sm:$0xff] %vm310, %v394
          %412 = vst.msk [vmem:[#allocation2 + $0x30] sm:$0xff] %vm310, %v397
          %413 = vst.msk [vmem:[#allocation2 + $0x38] sm:$0xff] %vm310, %v399
          %414 = vst.msk [vmem:[#allocation2 + $0x40] sm:$0xff] %vm310, %v402
          %415 = vst.msk [vmem:[#allocation2 + $0x48] sm:$0xff] %vm310, %v404
        $region48: #{tpu_custom_call.1} parent=31 // pred_fallthru
          _
        %p416 = scmp.gt.f32.partialorder %s289, 0.5
        // Predicated region
        $region49: #{tpu_custom_call.1} parent=31 // pred_check
          %p417 = pneg %p416
        $region50: #{tpu_custom_call.1} parent=31 // pred_check_branch
          %419 = sbr.rel (%p417) target = $region52
        $region51: #{tpu_custom_call.1} parent=31 // pred_region
          %v420 = vlaneseq
          %v421 = vshrl.u32 %v420, 7
          %v422 = vadd.s32 %v421, 8
          %v423 = vlaneseq
          %v424 = vand.u32 %v423, 127
          %v425 = vadd.s32 %v421, %v424
          %v426 = vadd.s32 %v422, %v424
          %vm427 = vcmp.eq.s32.totalorder %v425, 15
          %vm428 = vcmp.eq.s32.totalorder %v426, 15
          %v429 = vsel %vm427, 1, 0
          %v430 = vsel %vm428, 1, 0
          %v431 = vcvt.s32.f32 %v429
          %v432 = vcvt.s32.f32 %v430
          %v433 = vpack.c.bf16 %v432, %v431
          %v434 = vld [vmem:[#allocation2] sm:$0xff]
          %v435 = vld [vmem:[#allocation2 + $0x8] sm:$0xff]
          %v436 = vpack.c.bf16 %v435, %v434
          %v438 = vsel %vm310, %v433, 0
          %440 = vmatpush.bf16.msra.mxu0 0
          %441 = vmatpush.bf16.msra.mxu0 0
          %442 = vmatpush.bf16.msra.mxu0 0
          %443 = vmatpush.bf16.msra.mxu0 0
          %444 = vmatpush.bf16.msra.mxu0 0
          %445 = vmatpush.bf16.msra.mxu0 0
          %446 = vmatpush.bf16.msra.mxu0 0
          %447 = vmatpush.bf16.msra.mxu0 %v436
          %448 = vmatmul.bf16.gmra.mxu0 %v438
          %v449 = vpop.f32.mrf.mxu0
          %v450 = vadd.f32 0.0, %v449
          %v451 = vpop.f32.mrf.mxu0
          %v452 = vadd.f32 0.0, %v451
          %453 = vdwg.mxu0
          %454 = vst.msk [vmem:[#allocation2] sm:$0xff] %vm310, %v450
          %455 = vst.msk [vmem:[#allocation2 + $0x8] sm:$0xff] %vm310, %v452
          %s456 = scalar_lea.vmem [#allocation2], 16
          %v457 = vld [vmem:[%s456] sm:$0xff]
          %v458 = vld [vmem:[%s456 + $0x8] sm:$0xff]
          %v459 = vpack.c.bf16 %v458, %v457
          %460 = vmatpush.bf16.msra.mxu0 0
          %461 = vmatpush.bf16.msra.mxu0 0
          %462 = vmatpush.bf16.msra.mxu0 0
          %463 = vmatpush.bf16.msra.mxu0 0
          %464 = vmatpush.bf16.msra.mxu0 0
          %465 = vmatpush.bf16.msra.mxu0 0
          %466 = vmatpush.bf16.msra.mxu0 0
          %467 = vmatpush.bf16.msra.mxu0 %v459
          %468 = vmatmul.bf16.gmra.mxu0 %v438
          %v469 = vpop.f32.mrf.mxu0
          %v470 = vadd.f32 0.0, %v469
          %v471 = vpop.f32.mrf.mxu0
          %v472 = vadd.f32 0.0, %v471
          %473 = vdwg.mxu0
          %474 = vst.msk [vmem:[%s456] sm:$0xff] %vm310, %v470
          %475 = vst.msk [vmem:[%s456 + $0x8] sm:$0xff] %vm310, %v472
          %s476 = scalar_lea.vmem [#allocation2], 32
          %v477 = vld [vmem:[%s476] sm:$0xff]
          %v478 = vld [vmem:[%s476 + $0x8] sm:$0xff]
          %v479 = vpack.c.bf16 %v478, %v477
          %480 = vmatpush.bf16.msra.mxu0 0
          %481 = vmatpush.bf16.msra.mxu0 0
          %482 = vmatpush.bf16.msra.mxu0 0
          %483 = vmatpush.bf16.msra.mxu0 0
          %484 = vmatpush.bf16.msra.mxu0 0
          %485 = vmatpush.bf16.msra.mxu0 0
          %486 = vmatpush.bf16.msra.mxu0 0
          %487 = vmatpush.bf16.msra.mxu0 %v479
          %488 = vmatmul.bf16.gmra.mxu0 %v438
          %v489 = vpop.f32.mrf.mxu0
          %v490 = vadd.f32 0.0, %v489
          %v491 = vpop.f32.mrf.mxu0
          %v492 = vadd.f32 0.0, %v491
          %493 = vdwg.mxu0
          %494 = vst.msk [vmem:[%s476] sm:$0xff] %vm310, %v490
          %495 = vst.msk [vmem:[%s476 + $0x8] sm:$0xff] %vm310, %v492
          %s496 = scalar_lea.vmem [#allocation2], 48
          %v497 = vld [vmem:[%s496] sm:$0xff]
          %v498 = vld [vmem:[%s496 + $0x8] sm:$0xff]
          %v499 = vpack.c.bf16 %v498, %v497
          %500 = vmatpush.bf16.msra.mxu0 0
          %501 = vmatpush.bf16.msra.mxu0 0
          %502 = vmatpush.bf16.msra.mxu0 0
          %503 = vmatpush.bf16.msra.mxu0 0
          %504 = vmatpush.bf16.msra.mxu0 0
          %505 = vmatpush.bf16.msra.mxu0 0
          %506 = vmatpush.bf16.msra.mxu0 0
          %507 = vmatpush.bf16.msra.mxu0 %v499
          %508 = vmatmul.bf16.gmra.mxu0 %v438
          %v509 = vpop.f32.mrf.mxu0
          %v510 = vadd.f32 0.0, %v509
          %v511 = vpop.f32.mrf.mxu0
          %v512 = vadd.f32 0.0, %v511
          %513 = vdwg.mxu0
          %514 = vst.msk [vmem:[%s496] sm:$0xff] %vm310, %v510
          %515 = vst.msk [vmem:[%s496 + $0x8] sm:$0xff] %vm310, %v512
          %v516 = vld [vmem:[%s321] sm:$0xff]
          %v517 = vld [vmem:[%s321 + $0x8] sm:$0xff]
          %v518 = vpack.c.bf16 %v517, %v516
          %519 = vmatpush.bf16.msra.mxu0 0
          %520 = vmatpush.bf16.msra.mxu0 0
          %521 = vmatpush.bf16.msra.mxu0 0
          %522 = vmatpush.bf16.msra.mxu0 0
          %523 = vmatpush.bf16.msra.mxu0 0
          %524 = vmatpush.bf16.msra.mxu0 0
          %525 = vmatpush.bf16.msra.mxu0 0
          %526 = vmatpush.bf16.msra.mxu0 %v518
          %527 = vmatmul.bf16.gmra.mxu0 %v438
          %v528 = vpop.f32.mrf.mxu0
          %v529 = vadd.f32 0.0, %v528
          %v530 = vpop.f32.mrf.mxu0
          %v531 = vadd.f32 0.0, %v530
          %532 = vdwg.mxu0
          %533 = vst.msk [vmem:[%s321] sm:$0xff] %vm310, %v529
          %534 = vst.msk [vmem:[%s321 + $0x8] sm:$0xff] %vm310, %v531
        $region52: #{tpu_custom_call.1} parent=31 // pred_fallthru
          _
        %v535 = vld [vmem:[%s321] sm:$0xff]
        %v536 = vld [vmem:[%s321 + $0x8] sm:$0xff]
        %537 = vst.msk [vmem:[%s284] sm:$0xff] %vm310, %v535
        %538 = vst.msk [vmem:[%s284 + $0x8] sm:$0xff] %vm310, %v536
        %v539 = vld [vmem:[#allocation2] sm:$0xff]
        %v540 = vld [vmem:[#allocation2 + $0x8] sm:$0xff]
        %v541 = vld [vmem:[#allocation2 + $0x10] sm:$0xff]
        %v542 = vld [vmem:[#allocation2 + $0x18] sm:$0xff]
        %v543 = vld [vmem:[#allocation2 + $0x20] sm:$0xff]
        %v544 = vld [vmem:[#allocation2 + $0x28] sm:$0xff]
        %v545 = vld [vmem:[#allocation2 + $0x30] sm:$0xff]
        %v546 = vld [vmem:[#allocation2 + $0x38] sm:$0xff]
        %v547 = vstv %s291
        %v548 = vadd.f32 %v539, %v547
        %v549 = vadd.f32 %v540, %v547
        %v550 = vadd.f32 %v541, %v547
        %v551 = vadd.f32 %v542, %v547
        %v552 = vadd.f32 %v543, %v547
        %v553 = vadd.f32 %v544, %v547
        %v554 = vadd.f32 %v545, %v547
        %v555 = vadd.f32 %v546, %v547
        %v556 = vmax.f32 %v548, 0.0
        %v557 = vmax.f32 %v549, 0.0
        %v558 = vmax.f32 %v550, 0.0
        %v559 = vmax.f32 %v551, 0.0
        %v560 = vmax.f32 %v552, 0.0
        %v561 = vmax.f32 %v553, 0.0
        %v562 = vmax.f32 %v554, 0.0
        %v563 = vmax.f32 %v555, 0.0
        %v564 = vmin.f32 %v556, 1.0
        %v565 = vmin.f32 %v557, 1.0
        %v566 = vmin.f32 %v558, 1.0
        %v567 = vmin.f32 %v559, 1.0
        %v568 = vmin.f32 %v560, 1.0
        %v569 = vmin.f32 %v561, 1.0
        %v570 = vmin.f32 %v562, 1.0
        %v571 = vmin.f32 %v563, 1.0
        %v572 = vstv %s293
        %v573 = vmul.f32 %v564, %v572
        %v574 = vmul.f32 %v565, %v572
        %v575 = vmul.f32 %v566, %v572
        %v576 = vmul.f32 %v567, %v572
        %v577 = vmul.f32 %v568, %v572
        %v578 = vmul.f32 %v569, %v572
        %v579 = vmul.f32 %v570, %v572
        %v580 = vmul.f32 %v571, %v572
        %v581 = vmax.f32 %v573, 0.0
        %v582 = vmax.f32 %v574, 0.0
        %v583 = vmax.f32 %v575, 0.0
        %v584 = vmax.f32 %v576, 0.0
        %v585 = vmax.f32 %v577, 0.0
        %v586 = vmax.f32 %v578, 0.0
        %v587 = vmax.f32 %v579, 0.0
        %v588 = vmax.f32 %v580, 0.0
        %v589 = vmin.f32 %v581, 1.0
        %v590 = vmin.f32 %v582, 1.0
        %v591 = vmin.f32 %v583, 1.0
        %v592 = vmin.f32 %v584, 1.0
        %v593 = vmin.f32 %v585, 1.0
        %v594 = vmin.f32 %v586, 1.0
        %v595 = vmin.f32 %v587, 1.0
        %v596 = vmin.f32 %v588, 1.0
        %v597 = vmax.f32 %v589, 1e-06
        %v598 = vmax.f32 %v590, 1e-06
        %v599 = vmax.f32 %v591, 1e-06
        %v600 = vmax.f32 %v592, 1e-06
        %v601 = vmax.f32 %v593, 1e-06
        %v602 = vmax.f32 %v594, 1e-06
        %v603 = vmax.f32 %v595, 1e-06
        %v604 = vmax.f32 %v596, 1e-06
        %v605 = vlog2.pop %v597
        %v606 = vmul.f32 %v605, 0.6931472
        %v607 = vlog2.pop %v598
        %v608 = vmul.f32 %v607, 0.6931472
        %v609 = vlog2.pop %v599
        %v610 = vmul.f32 %v609, 0.6931472
        %v611 = vlog2.pop %v600
        %v612 = vmul.f32 %v611, 0.6931472
        %v613 = vlog2.pop %v601
        %v614 = vmul.f32 %v613, 0.6931472
        %v615 = vlog2.pop %v602
        %v616 = vmul.f32 %v615, 0.6931472
        %v617 = vlog2.pop %v603
        %v618 = vmul.f32 %v617, 0.6931472
        %v619 = vlog2.pop %v604
        %v620 = vmul.f32 %v619, 0.6931472
        %v621 = vstv %s295
        %v622 = vmul.f32 %v621, %v606
        %v623 = vmul.f32 %v621, %v608
        %v624 = vmul.f32 %v621, %v610
        %v625 = vmul.f32 %v621, %v612
        %v626 = vmul.f32 %v621, %v614
        %v627 = vmul.f32 %v621, %v616
        %v628 = vmul.f32 %v621, %v618
        %v629 = vmul.f32 %v621, %v620
        %v630 = vmul.f32 %v622, 1.442695
        %v631 = vpow.pop %v630
        %v632 = vmul.f32 %v623, 1.442695
        %v633 = vpow.pop %v632
        %v634 = vmul.f32 %v624, 1.442695
        %v635 = vpow.pop %v634
        %v636 = vmul.f32 %v625, 1.442695
        %v637 = vpow.pop %v636
        %v638 = vmul.f32 %v626, 1.442695
        %v639 = vpow.pop %v638
        %v640 = vmul.f32 %v627, 1.442695
        %v641 = vpow.pop %v640
        %v642 = vmul.f32 %v628, 1.442695
        %v643 = vpow.pop %v642
        %v644 = vmul.f32 %v629, 1.442695
        %v645 = vpow.pop %v644
        %p646 = scmp.le.f32.partialorder %s297, 0.5
        // Predicated region
        $region53: #{tpu_custom_call.1} parent=31 // pred_check
          %p647 = pneg %p646
        $region54: #{tpu_custom_call.1} parent=31 // pred_check_branch
          %649 = sbr.rel (%p647) target = $region56
        $region55: #{tpu_custom_call.1} parent=31 // pred_region
          %650 = vst.msk [vmem:[%s277] sm:$0xff] %vm310, %v631
          %651 = vst.msk [vmem:[%s277 + $0x8] sm:$0xff] %vm310, %v633
          %652 = vst.msk [vmem:[%s277 + $0x10] sm:$0xff] %vm310, %v635
          %653 = vst.msk [vmem:[%s277 + $0x18] sm:$0xff] %vm310, %v637
          %654 = vst.msk [vmem:[%s277 + $0x20] sm:$0xff] %vm310, %v639
          %655 = vst.msk [vmem:[%s277 + $0x28] sm:$0xff] %vm310, %v641
          %656 = vst.msk [vmem:[%s277 + $0x30] sm:$0xff] %vm310, %v643
          %657 = vst.msk [vmem:[%s277 + $0x38] sm:$0xff] %vm310, %v645
        $region56: #{tpu_custom_call.1} parent=31 // pred_fallthru
          _
        %p658 = scmp.gt.f32.partialorder %s297, 0.5
        // Predicated region
        $region57: #{tpu_custom_call.1} parent=31 // pred_check
          %p659 = pneg %p658
        $region58: #{tpu_custom_call.1} parent=31 // pred_check_branch
          %661 = sbr.rel (%p659) target = $region60
        $region59: #{tpu_custom_call.1} parent=31 // pred_region
          %v662 = vlaneseq
          %v663 = vand.u32 %v662, 127
          %v664 = vlaneseq
          %v665 = vshrl.u32 %v664, 7
          %v666 = vadd.s32 %v665, 8
          %vm667 = vcmp.eq.s32.totalorder %v663, 0
          %v668 = vsel %vm667, 1, 0
          %v669 = vcvt.s32.f32 %v668
          %vm670 = vcmp.eq.s32.totalorder %v663, 15
          %v671 = vsel %vm670, 1, 0
          %v672 = vcvt.s32.f32 %v671
          %vm673 = vcmp.eq.s32.totalorder %v665, 0
          %vm674 = vcmp.eq.s32.totalorder %v666, 0
          %v675 = vsel %vm673, 1, 0
          %v676 = vsel %vm674, 1, 0
          %v677 = vcvt.s32.f32 %v675
          %v678 = vcvt.s32.f32 %v676
          %vm679 = vcmp.eq.s32.totalorder %v665, 15
          %vm680 = vcmp.eq.s32.totalorder %v666, 15
          %v681 = vsel %vm679, 1, 0
          %v682 = vsel %vm680, 1, 0
          %v683 = vcvt.s32.f32 %v681
          %v684 = vcvt.s32.f32 %v682
          %vm685 = vcmask 1047680
          %686 = vrot.lane.b32.xlu0 %v631, 16
          %v687 = vpop.permute.xlu0 %686
          %v688 = vsel %vm685, %v687, %v631
          %689 = vrot.lane.b32.xlu0 %v633, 16
          %v690 = vpop.permute.xlu0 %689
          %v691 = vsel %vm685, %v690, %v633
          %692 = vrot.lane.b32.xlu0 %v635, 16
          %v693 = vpop.permute.xlu0 %692
          %v694 = vsel %vm685, %v693, %v635
          %695 = vrot.lane.b32.xlu0 %v637, 16
          %v696 = vpop.permute.xlu0 %695
          %v697 = vsel %vm685, %v696, %v637
          %698 = vrot.lane.b32.xlu0 %v639, 16
          %v699 = vpop.permute.xlu0 %698
          %v700 = vsel %vm685, %v699, %v639
          %701 = vrot.lane.b32.xlu0 %v641, 16
          %v702 = vpop.permute.xlu0 %701
          %v703 = vsel %vm685, %v702, %v641
          %704 = vrot.lane.b32.xlu0 %v643, 16
          %v705 = vpop.permute.xlu0 %704
          %v706 = vsel %vm685, %v705, %v643
          %707 = vrot.lane.b32.xlu0 %v645, 16
          %v708 = vpop.permute.xlu0 %707
          %v709 = vsel %vm685, %v708, %v645
          %710 = vrot.lane.b32.xlu0 %v688, 16
          %v711 = vpop.permute.xlu0 %710
          %712 = vrot.lane.b32.xlu0 %v691, 16
          %v713 = vpop.permute.xlu0 %712
          %714 = vrot.lane.b32.xlu0 %v694, 16
          %v715 = vpop.permute.xlu0 %714
          %716 = vrot.lane.b32.xlu0 %v697, 16
          %v717 = vpop.permute.xlu0 %716
          %718 = vrot.lane.b32.xlu0 %v700, 16
          %v719 = vpop.permute.xlu0 %718
          %720 = vrot.lane.b32.xlu0 %v703, 16
          %v721 = vpop.permute.xlu0 %720
          %722 = vrot.lane.b32.xlu0 %v706, 16
          %v723 = vpop.permute.xlu0 %722
          %724 = vrot.lane.b32.xlu0 %v709, 16
          %v725 = vpop.permute.xlu0 %724
          %v726 = vsel %vm685, %v711, %v631
          %v727 = vsel %vm685, %v713, %v633
          %v728 = vsel %vm685, %v715, %v635
          %v729 = vsel %vm685, %v717, %v637
          %v730 = vsel %vm685, %v719, %v639
          %v731 = vsel %vm685, %v721, %v641
          %v732 = vsel %vm685, %v723, %v643
          %v733 = vsel %vm685, %v725, %v645
          %742 = vrot.lane.b32.xlu0 %v726, 14
          %v743 = vpop.permute.xlu0 %742
          %744 = vrot.lane.b32.xlu0 %v727, 14
          %v745 = vpop.permute.xlu0 %744
          %746 = vrot.lane.b32.xlu0 %v728, 14
          %v747 = vpop.permute.xlu0 %746
          %748 = vrot.lane.b32.xlu0 %v729, 14
          %v749 = vpop.permute.xlu0 %748
          %750 = vrot.lane.b32.xlu0 %v730, 14
          %v751 = vpop.permute.xlu0 %750
          %752 = vrot.lane.b32.xlu0 %v731, 14
          %v753 = vpop.permute.xlu0 %752
          %754 = vrot.lane.b32.xlu0 %v732, 14
          %v755 = vpop.permute.xlu0 %754
          %756 = vrot.lane.b32.xlu0 %v733, 14
          %v757 = vpop.permute.xlu0 %756
          %v766 = vadd.f32 %v726, %v743
          %v767 = vadd.f32 %v727, %v745
          %v768 = vadd.f32 %v728, %v747
          %v769 = vadd.f32 %v729, %v749
          %v770 = vadd.f32 %v730, %v751
          %v771 = vadd.f32 %v731, %v753
          %v772 = vadd.f32 %v732, %v755
          %v773 = vadd.f32 %v733, %v757
          %v774 = vstv %s301
          %v775 = vmul.f32 %v774, %v631
          %v776 = vmul.f32 %v774, %v633
          %v777 = vmul.f32 %v774, %v635
          %v778 = vmul.f32 %v774, %v637
          %v779 = vmul.f32 %v774, %v639
          %v780 = vmul.f32 %v774, %v641
          %v781 = vmul.f32 %v774, %v643
          %v782 = vmul.f32 %v774, %v645
          %v783 = vstv %s299
          %v784 = vmul.f32 %v783, %v766
          %v785 = vmul.f32 %v783, %v767
          %v786 = vmul.f32 %v783, %v768
          %v787 = vmul.f32 %v783, %v769
          %v788 = vmul.f32 %v783, %v770
          %v789 = vmul.f32 %v783, %v771
          %v790 = vmul.f32 %v783, %v772
          %v791 = vmul.f32 %v783, %v773
          %800 = vrot.lane.b32.xlu0 %v784, 113
          %v801 = vpop.permute.xlu0 %800
          %802 = vrot.lane.b32.xlu0 %v785, 113
          %v803 = vpop.permute.xlu0 %802
          %804 = vrot.lane.b32.xlu0 %v786, 113
          %v805 = vpop.permute.xlu0 %804
          %806 = vrot.lane.b32.xlu0 %v787, 113
          %v807 = vpop.permute.xlu0 %806
          %808 = vrot.lane.b32.xlu0 %v788, 113
          %v809 = vpop.permute.xlu0 %808
          %810 = vrot.lane.b32.xlu0 %v789, 113
          %v811 = vpop.permute.xlu0 %810
          %812 = vrot.lane.b32.xlu0 %v790, 113
          %v813 = vpop.permute.xlu0 %812
          %814 = vrot.lane.b32.xlu0 %v791, 113
          %v815 = vpop.permute.xlu0 %814
          %v824 = vadd.f32 %v775, %v801
          %v825 = vadd.f32 %v776, %v803
          %v826 = vadd.f32 %v777, %v805
          %v827 = vadd.f32 %v778, %v807
          %v828 = vadd.f32 %v779, %v809
          %v829 = vadd.f32 %v780, %v811
          %v830 = vadd.f32 %v781, %v813
          %v831 = vadd.f32 %v782, %v815
          %v832 = vmul.f32 %v783, %v669
          %841 = vrot.lane.b32.xlu0 %v631, 114
          %v842 = vpop.permute.xlu0 %841
          %843 = vrot.lane.b32.xlu0 %v633, 114
          %v844 = vpop.permute.xlu0 %843
          %845 = vrot.lane.b32.xlu0 %v635, 114
          %v846 = vpop.permute.xlu0 %845
          %847 = vrot.lane.b32.xlu0 %v637, 114
          %v848 = vpop.permute.xlu0 %847
          %849 = vrot.lane.b32.xlu0 %v639, 114
          %v850 = vpop.permute.xlu0 %849
          %851 = vrot.lane.b32.xlu0 %v641, 114
          %v852 = vpop.permute.xlu0 %851
          %853 = vrot.lane.b32.xlu0 %v643, 114
          %v854 = vpop.permute.xlu0 %853
          %855 = vrot.lane.b32.xlu0 %v645, 114
          %v856 = vpop.permute.xlu0 %855
          %v865 = vsub.f32 %v631, %v842
          %v866 = vsub.f32 %v633, %v844
          %v867 = vsub.f32 %v635, %v846
          %v868 = vsub.f32 %v637, %v848
          %v869 = vsub.f32 %v639, %v850
          %v870 = vsub.f32 %v641, %v852
          %v871 = vsub.f32 %v643, %v854
          %v872 = vsub.f32 %v645, %v856
          %874 = vset.pattern.permute.xlu0 1
          %875 = vperm.xlu0 %874, %v865
          %v876 = vpop.permute.xlu0 %875
          %879 = vset.pattern.permute.xlu0 1
          %880 = vperm.xlu0 %879, %v866
          %v881 = vpop.permute.xlu0 %880
          %884 = vset.pattern.permute.xlu0 1
          %885 = vperm.xlu0 %884, %v867
          %v886 = vpop.permute.xlu0 %885
          %889 = vset.pattern.permute.xlu0 1
          %890 = vperm.xlu0 %889, %v868
          %v891 = vpop.permute.xlu0 %890
          %894 = vset.pattern.permute.xlu0 1
          %895 = vperm.xlu0 %894, %v869
          %v896 = vpop.permute.xlu0 %895
          %899 = vset.pattern.permute.xlu0 1
          %900 = vperm.xlu0 %899, %v870
          %v901 = vpop.permute.xlu0 %900
          %904 = vset.pattern.permute.xlu0 1
          %905 = vperm.xlu0 %904, %v871
          %v906 = vpop.permute.xlu0 %905
          %909 = vset.pattern.permute.xlu0 1
          %910 = vperm.xlu0 %909, %v872
          %v911 = vpop.permute.xlu0 %910
          %v913 = vmul.f32 %v832, %v876
          %v914 = vmul.f32 %v832, %v881
          %v915 = vmul.f32 %v832, %v886
          %v916 = vmul.f32 %v832, %v891
          %v917 = vmul.f32 %v832, %v896
          %v918 = vmul.f32 %v832, %v901
          %v919 = vmul.f32 %v832, %v906
          %v920 = vmul.f32 %v832, %v911
          %v921 = vadd.f32 %v824, %v913
          %v922 = vadd.f32 %v825, %v914
          %v923 = vadd.f32 %v826, %v915
          %v924 = vadd.f32 %v827, %v916
          %v925 = vadd.f32 %v828, %v917
          %v926 = vadd.f32 %v829, %v918
          %v927 = vadd.f32 %v830, %v919
          %v928 = vadd.f32 %v831, %v920
          %v929 = vmul.f32 %v783, %v672
          %930 = vrot.lane.b32.xlu0 %v631, 14
          %v931 = vpop.permute.xlu0 %930
          %932 = vrot.lane.b32.xlu0 %v633, 14
          %v933 = vpop.permute.xlu0 %932
          %934 = vrot.lane.b32.xlu0 %v635, 14
          %v935 = vpop.permute.xlu0 %934
          %936 = vrot.lane.b32.xlu0 %v637, 14
          %v937 = vpop.permute.xlu0 %936
          %938 = vrot.lane.b32.xlu0 %v639, 14
          %v939 = vpop.permute.xlu0 %938
          %940 = vrot.lane.b32.xlu0 %v641, 14
          %v941 = vpop.permute.xlu0 %940
          %942 = vrot.lane.b32.xlu0 %v643, 14
          %v943 = vpop.permute.xlu0 %942
          %944 = vrot.lane.b32.xlu0 %v645, 14
          %v945 = vpop.permute.xlu0 %944
          %v954 = vsub.f32 %v631, %v931
          %v955 = vsub.f32 %v633, %v933
          %v956 = vsub.f32 %v635, %v935
          %v957 = vsub.f32 %v637, %v937
          %v958 = vsub.f32 %v639, %v939
          %v959 = vsub.f32 %v641, %v941
          %v960 = vsub.f32 %v643, %v943
          %v961 = vsub.f32 %v645, %v945
          %963 = vset.pattern.permute.xlu0 14
          %964 = vperm.xlu0 %963, %v954
          %v965 = vpop.permute.xlu0 %964
          %968 = vset.pattern.permute.xlu0 14
          %969 = vperm.xlu0 %968, %v955
          %v970 = vpop.permute.xlu0 %969
          %973 = vset.pattern.permute.xlu0 14
          %974 = vperm.xlu0 %973, %v956
          %v975 = vpop.permute.xlu0 %974
          %978 = vset.pattern.permute.xlu0 14
          %979 = vperm.xlu0 %978, %v957
          %v980 = vpop.permute.xlu0 %979
          %983 = vset.pattern.permute.xlu0 14
          %984 = vperm.xlu0 %983, %v958
          %v985 = vpop.permute.xlu0 %984
          %988 = vset.pattern.permute.xlu0 14
          %989 = vperm.xlu0 %988, %v959
          %v990 = vpop.permute.xlu0 %989
          %993 = vset.pattern.permute.xlu0 14
          %994 = vperm.xlu0 %993, %v960
          %v995 = vpop.permute.xlu0 %994
          %998 = vset.pattern.permute.xlu0 14
          %999 = vperm.xlu0 %998, %v961
          %v1000 = vpop.permute.xlu0 %999
          %v1002 = vmul.f32 %v929, %v965
          %v1003 = vmul.f32 %v929, %v970
          %v1004 = vmul.f32 %v929, %v975
          %v1005 = vmul.f32 %v929, %v980
          %v1006 = vmul.f32 %v929, %v985
          %v1007 = vmul.f32 %v929, %v990
          %v1008 = vmul.f32 %v929, %v995
          %v1009 = vmul.f32 %v929, %v1000
          %v1010 = vadd.f32 %v921, %v1002
          %v1011 = vadd.f32 %v922, %v1003
          %v1012 = vadd.f32 %v923, %v1004
          %v1013 = vadd.f32 %v924, %v1005
          %v1014 = vadd.f32 %v925, %v1006
          %v1015 = vadd.f32 %v926, %v1007
          %v1016 = vadd.f32 %v927, %v1008
          %v1017 = vadd.f32 %v928, %v1009
          %v1018 = vrot.slane %v1010, 7
          %v1019 = vrot.slane %v1011, 7
          %v1020 = vrot.slane %v1012, 7
          %v1021 = vrot.slane %v1013, 7
          %v1022 = vrot.slane %v1014, 7
          %v1023 = vrot.slane %v1015, 7
          %v1024 = vrot.slane %v1016, 7
          %v1025 = vrot.slane %v1017, 7
          %vm1026 = vcmp.lt.s32.totalorder %v665, 1
          %v1027 = vsel %vm1026, %v1024, %v1025
          %v1028 = vsel %vm1026, %v1023, %v1024
          %v1029 = vsel %vm1026, %v1022, %v1023
          %v1030 = vsel %vm1026, %v1021, %v1022
          %v1031 = vsel %vm1026, %v1020, %v1021
          %v1032 = vsel %vm1026, %v1019, %v1020
          %v1033 = vsel %vm1026, %v1018, %v1019
          %v1034 = vsel %vm1026, %v1025, %v1018
          %v1035 = vrot.slane %v1010, 1
          %v1036 = vrot.slane %v1011, 1
          %v1037 = vrot.slane %v1012, 1
          %v1038 = vrot.slane %v1013, 1
          %v1039 = vrot.slane %v1014, 1
          %v1040 = vrot.slane %v1015, 1
          %v1041 = vrot.slane %v1016, 1
          %v1042 = vrot.slane %v1017, 1
          %vm1043 = vcmp.lt.s32.totalorder %v665, 7
          %v1044 = vsel %vm1043, %v1041, %v1042
          %v1045 = vsel %vm1043, %v1040, %v1041
          %v1046 = vsel %vm1043, %v1039, %v1040
          %v1047 = vsel %vm1043, %v1038, %v1039
          %v1048 = vsel %vm1043, %v1037, %v1038
          %v1049 = vsel %vm1043, %v1036, %v1037
          %v1050 = vsel %vm1043, %v1035, %v1036
          %v1051 = vsel %vm1043, %v1042, %v1035
          %v1052 = vmul.f32 %v774, %v1010
          %v1053 = vmul.f32 %v774, %v1011
          %v1054 = vmul.f32 %v774, %v1012
          %v1055 = vmul.f32 %v774, %v1013
          %v1056 = vmul.f32 %v774, %v1014
          %v1057 = vmul.f32 %v774, %v1015
          %v1058 = vmul.f32 %v774, %v1016
          %v1059 = vmul.f32 %v774, %v1017
          %v1060 = vadd.f32 %v1034, %v1050
          %v1061 = vadd.f32 %v1033, %v1049
          %v1062 = vadd.f32 %v1032, %v1048
          %v1063 = vadd.f32 %v1031, %v1047
          %v1064 = vadd.f32 %v1030, %v1046
          %v1065 = vadd.f32 %v1029, %v1045
          %v1066 = vadd.f32 %v1028, %v1044
          %v1067 = vadd.f32 %v1027, %v1051
          %v1068 = vmul.f32 %v783, %v1060
          %v1069 = vmul.f32 %v783, %v1061
          %v1070 = vmul.f32 %v783, %v1062
          %v1071 = vmul.f32 %v783, %v1063
          %v1072 = vmul.f32 %v783, %v1064
          %v1073 = vmul.f32 %v783, %v1065
          %v1074 = vmul.f32 %v783, %v1066
          %v1075 = vmul.f32 %v783, %v1067
          %v1076 = vadd.f32 %v1052, %v1068
          %v1077 = vadd.f32 %v1053, %v1069
          %v1078 = vadd.f32 %v1054, %v1070
          %v1079 = vadd.f32 %v1055, %v1071
          %v1080 = vadd.f32 %v1056, %v1072
          %v1081 = vadd.f32 %v1057, %v1073
          %v1082 = vadd.f32 %v1058, %v1074
          %v1083 = vadd.f32 %v1059, %v1075
          %v1084 = vmul.f32 %v783, %v677
          %v1085 = vmul.f32 %v783, %v678
          %v1090 = vrot.slane %v1034, 7
          %v1091 = vrot.slane %v1032, 7
          %v1092 = vrot.slane %v1030, 7
          %v1093 = vrot.slane %v1028, 7
          %v1098 = vsub.f32 %v1010, %v1090
          %v1099 = vsub.f32 %v1012, %v1091
          %v1100 = vsub.f32 %v1014, %v1092
          %v1101 = vsub.f32 %v1016, %v1093
          %v1102 = vperm.slane %v1098, 1
          %v1103 = vperm.slane %v1099, 1
          %v1104 = vperm.slane %v1100, 1
          %v1105 = vperm.slane %v1101, 1
          %v1106 = vmul.f32 %v1084, %v1102
          %v1107 = vmul.f32 %v1085, %v1102
          %v1108 = vmul.f32 %v1084, %v1103
          %v1109 = vmul.f32 %v1085, %v1103
          %v1110 = vmul.f32 %v1084, %v1104
          %v1111 = vmul.f32 %v1085, %v1104
          %v1112 = vmul.f32 %v1084, %v1105
          %v1113 = vmul.f32 %v1085, %v1105
          %v1114 = vadd.f32 %v1076, %v1106
          %v1115 = vadd.f32 %v1077, %v1107
          %v1116 = vadd.f32 %v1078, %v1108
          %v1117 = vadd.f32 %v1079, %v1109
          %v1118 = vadd.f32 %v1080, %v1110
          %v1119 = vadd.f32 %v1081, %v1111
          %v1120 = vadd.f32 %v1082, %v1112
          %v1121 = vadd.f32 %v1083, %v1113
          %v1122 = vmul.f32 %v783, %v683
          %v1123 = vmul.f32 %v783, %v684
          %v1128 = vrot.slane %v1049, 1
          %v1129 = vrot.slane %v1047, 1
          %v1130 = vrot.slane %v1045, 1
          %v1131 = vrot.slane %v1051, 1
          %v1136 = vsub.f32 %v1011, %v1128
          %v1137 = vsub.f32 %v1013, %v1129
          %v1138 = vsub.f32 %v1015, %v1130
          %v1139 = vsub.f32 %v1017, %v1131
          %v1140 = vperm.slane %v1136, 6
          %v1141 = vperm.slane %v1137, 6
          %v1142 = vperm.slane %v1138, 6
          %v1143 = vperm.slane %v1139, 6
          %v1144 = vmul.f32 %v1122, %v1140
          %v1145 = vmul.f32 %v1123, %v1140
          %v1146 = vmul.f32 %v1122, %v1141
          %v1147 = vmul.f32 %v1123, %v1141
          %v1148 = vmul.f32 %v1122, %v1142
          %v1149 = vmul.f32 %v1123, %v1142
          %v1150 = vmul.f32 %v1122, %v1143
          %v1151 = vmul.f32 %v1123, %v1143
          %v1152 = vadd.f32 %v1114, %v1144
          %v1153 = vadd.f32 %v1115, %v1145
          %v1154 = vadd.f32 %v1116, %v1146
          %v1155 = vadd.f32 %v1117, %v1147
          %v1156 = vadd.f32 %v1118, %v1148
          %v1157 = vadd.f32 %v1119, %v1149
          %v1158 = vadd.f32 %v1120, %v1150
          %v1159 = vadd.f32 %v1121, %v1151
          %1160 = vst.msk [vmem:[%s277] sm:$0xff] %vm310, %v1152
          %1161 = vst.msk [vmem:[%s277 + $0x8] sm:$0xff] %vm310, %v1153
          %1162 = vst.msk [vmem:[%s277 + $0x10] sm:$0xff] %vm310, %v1154
          %1163 = vst.msk [vmem:[%s277 + $0x18] sm:$0xff] %vm310, %v1155
          %1164 = vst.msk [vmem:[%s277 + $0x20] sm:$0xff] %vm310, %v1156
          %1165 = vst.msk [vmem:[%s277 + $0x28] sm:$0xff] %vm310, %v1157
          %1166 = vst.msk [vmem:[%s277 + $0x30] sm:$0xff] %vm310, %v1158
          %1167 = vst.msk [vmem:[%s277 + $0x38] sm:$0xff] %vm310, %v1159
        $region60: #{tpu_custom_call.1} parent=31 // pred_fallthru
          _
        %s1168 = sand.u32 %s110, 1
        %s1169 = scalar_lea.sflag [#allocation5], %s1168
        %s1170 = sand.u32 %s110, 1
        %s1171 = smul.addr %s1170, 64
        %s1172 = scalar_lea.vmem [#allocation10], %s1171
        %s1173 = sand.u32 %s136, 1
        %s1174 = scalar_lea.sflag [#allocation12], %s1173
        %s1175 = sand.u32 %s136, 1
        %s1176 = smul.addr %s1175, 16
        %s1177 = scalar_lea.vmem [#allocation11], %s1176
        // Predicated region
        $region61: #{tpu_custom_call.1} parent=31 // pred_check
          %p1178 = pneg %p120
        $region62: #{tpu_custom_call.1} parent=31 // pred_check_branch
          %1180 = sbr.rel (%p1178) target = $region64
        $region63: #{tpu_custom_call.1} parent=31 // pred_region
          %1182 = vsyncadd %s1169, 0
          %s1183 = smul.addr %s29, 8
          %s1184 = smul.addr %s1183, 8
          %s1185 = scalar_lea.hbm %s3, %s1184
          %s1186 = sshll.u32 %s1172, 4
          %s1187 = int_to_ptr.vmem [resolvable:$true] %s1186
          %s1188 = sshll.u32 %s1185, 4
          %s1189 = int_to_ptr.hbm [resolvable:$true] %s1188
          %1194 = dma.vmem_to_hbm [thread:$0]  %s1187, 1024, %s1189, %s1169, 128, 128, 8
        $region64: #{tpu_custom_call.1} parent=31 // pred_fallthru
          _
        // Predicated region
        $region65: #{tpu_custom_call.1} parent=31 // pred_check
          %p1195 = pneg %p146
        $region66: #{tpu_custom_call.1} parent=31 // pred_check_branch
          %1197 = sbr.rel (%p1195) target = $region68
        $region67: #{tpu_custom_call.1} parent=31 // pred_region
          %1199 = vsyncadd %s1174, 0
          %s1200 = smul.addr %s29, 2
          %s1201 = smul.addr %s1200, 8
          %s1202 = scalar_lea.hbm %s4, %s1201
          %s1203 = sshll.u32 %s1177, 4
          %s1204 = int_to_ptr.vmem [resolvable:$true] %s1203
          %s1205 = sshll.u32 %s1202, 4
          %s1206 = int_to_ptr.hbm [resolvable:$true] %s1205
          %1211 = dma.vmem_to_hbm [thread:$0]  %s1204, 256, %s1206, %s1174, 128, 128, 8
        $region68: #{tpu_custom_call.1} parent=31 // pred_fallthru
          _
      $region32: #{tpu_custom_call.1} parent=5 // pred_fallthru
        _
      %p1212 = scmp.le.s32.totalorder 2, %s24
      // Predicated region
      $region69: #{tpu_custom_call.1} parent=5 // pred_check
        %p1213 = pneg %p1212
      $region70: #{tpu_custom_call.1} parent=5 // pred_check_branch
        %1215 = sbr.rel (%p1213) target = $region72
      $region71: #{tpu_custom_call.1} parent=5 // pred_region
        %s1216 = ssub.s32 %s24, 2
        // Predicated region
        $region73: #{tpu_custom_call.1} parent=71 // pred_check
          %p1217 = pneg %p126
        $region74: #{tpu_custom_call.1} parent=71 // pred_check_branch
          %1219 = sbr.rel (%p1217) target = $region76
        $region75: #{tpu_custom_call.1} parent=71 // pred_region
          %s1220 = sand.u32 %s111, 1
          %s1221 = scalar_lea.sflag [#allocation5], %s1220
          %s1222 = sand.u32 %s111, 1
          %s1223 = smul.addr %s1222, 64
          %s1224 = scalar_lea.vmem [#allocation10], %s1223
          %1226 = dma.done %s1221, 1024
        $region76: #{tpu_custom_call.1} parent=71 // pred_fallthru
          _
        // Predicated region
        $region77: #{tpu_custom_call.1} parent=71 // pred_check
          %p1227 = pneg %p152
        $region78: #{tpu_custom_call.1} parent=71 // pred_check_branch
          %1229 = sbr.rel (%p1227) target = $region80
        $region79: #{tpu_custom_call.1} parent=71 // pred_region
          %s1230 = sand.u32 %s137, 1
          %s1231 = scalar_lea.sflag [#allocation12], %s1230
          %s1232 = sand.u32 %s137, 1
          %s1233 = smul.addr %s1232, 16
          %s1234 = scalar_lea.vmem [#allocation11], %s1233
          %1236 = dma.done %s1231, 256
        $region80: #{tpu_custom_call.1} parent=71 // pred_fallthru
          _
      $region72: #{tpu_custom_call.1} parent=5 // pred_fallthru
        _
    $region6: #{tpu_custom_call.1} parent=1 // loop_footer
      %s28 = sadd.s32 1, %s24
    $region7: #{tpu_custom_call.1} parent=1 // loop_footer_branch
      %23 = sbr.rel target = $region3
    $region8: #{tpu_custom_call.1} parent=1 // loop_exit
      _
    %1237 = vsyncpa [#allocation4], 1
    %s1238 = scalar_lea.sflag [#allocation4], 1
    %1239 = vsyncpa %s1238, 1
    %1240 = vsyncpa [#allocation9], 1
    %s1241 = scalar_lea.sflag [#allocation9], 1
    %1242 = vsyncpa %s1241, 1
    %1243 = vsyncpa [#allocation5], 1
    %s1244 = scalar_lea.sflag [#allocation5], 1
    %1245 = vsyncpa %s1244, 1
    %1246 = vsyncpa [#allocation12], 1
    %s1247 = scalar_lea.sflag [#allocation12], 1
    %1248 = vsyncpa %s1247, 1
    %1249 = vsyncpa [#allocation6], 1
    %s1250 = scalar_lea.sflag [#allocation6], 1
    %1251 = vsyncpa %s1250, 1

</llo_original>
